<compile_context>
chip_gen: v7x
topology: tpu7x:2x2x1
jax: 0.10.0
libtpu: 0.0.40
codegen_flags: <defaults>
</compile_context>

<pallas_src>
import functools

import jax
import jax.numpy as jnp
from jax.experimental import pallas as pl
from jax.experimental.pallas import tpu as pltpu

LANE = 128
SUBLANE = 8


def _round_up(x, m):
    return (x + m - 1) // m * m


# ----------------------------- Pallas kernel --------------------------------

def _fused_gnn_kernel(edge_ref, x_ref, w_ref, b_ref, o_ref, *,
                      num_nodes, num_edges, n_pad, gcn_layers, lin_layer):
    """Fused GNN forward for a single graph.

    edge_ref : SMEM [2, E] int32   (row 0 = src, row 1 = dst)
    x_ref    : VMEM [n_pad, C0] f32 node features (zero-padded rows)
    w_ref    : VMEM [R, 128] f32    packed weights (GCN layers + Linear)
    b_ref    : VMEM [8, 128] f32    packed biases (row i = bias of layer i)
    o_ref    : VMEM [n_pad, 128] f32 lane-dense output slab
    gcn_layers: tuple of (row_offset, c_in, c_out) into w_ref per GCN layer
    lin_layer : (row_offset, c_in, c_out_padded) for the final Linear
    """
    f32 = jnp.float32

    # ---- Build A_hat = D^-1/2 (A + remaining self loops) D^-1/2 in VMEM ----
    row_ids = jax.lax.broadcasted_iota(jnp.int32, (n_pad, n_pad), 0)
    col_ids = jax.lax.broadcasted_iota(jnp.int32, (n_pad, n_pad), 1)

    a = jnp.zeros((n_pad, n_pad), f32)
    # Parallel edges are scatter-ADDed (counts), matching PyG.  E is small and
    # static, so this is a fully unrolled VPU loop (~5 ops/edge) with zero HBM
    # traffic for A.
    for e in range(num_edges):
        src = edge_ref[0, e]
        dst = edge_ref[1, e]
        a = a + ((row_ids == dst) & (col_ids == src)).astype(f32)

    # add_remaining_self_loops: only real nodes that lack one get a self loop.
    on_diag = (row_ids == col_ids) & (row_ids < num_nodes)
    a = jnp.where(on_diag & (a == 0.0), 1.0, a)

    # Symmetric normalization; deg over incoming edges == row sums of A.
    deg = jnp.sum(a, axis=1, keepdims=True)                          # [n_pad,1]
    d = jnp.where(deg > 0.0, jax.lax.rsqrt(jnp.maximum(deg, 1.0)), 0.0)
    # Same d as a [1, n_pad] row without a transpose: reduce the diag-masked
    # broadcast across sublanes (XLU, done once).
    d_row = jnp.sum(jnp.where(row_ids == col_ids, d, 0.0),
                    axis=0, keepdims=True)                           # [1,n_pad]
    a_hat = a * d * d_row   # fold both scalings once; padded rows/cols stay 0

    # ------------------------------ GCN layers -------------------------------
    h = x_ref[...]
    for li, (r0, c_in, c_out) in enumerate(gcn_layers):
        w = w_ref[r0:r0 + c_in, 0:c_out]
        b = b_ref[li:li + 1, 0:c_out]
        if c_in < c_out:
            # Propagate while the feature dim is narrow: (A_hat @ H) @ W.
            h = jnp.dot(jnp.dot(a_hat, h, preferred_element_type=f32), w,
                        preferred_element_type=f32)
        else:
            # A_hat @ (H @ W)
            h = jnp.dot(a_hat, jnp.dot(h, w, preferred_element_type=f32),
                        preferred_element_type=f32)
        h = jnp.maximum(h + b, 0.0)          # bias + ReLU epilogue (VPU)

    # ------------------------------ Final Linear -----------------------------
    r0, c_in, c_out_pad = lin_layer
    w_lin = w_ref[r0:r0 + c_in, 0:c_out_pad]
    b_lin = b_ref[len(gcn_layers):len(gcn_layers) + 1, 0:c_out_pad]
    out = jnp.dot(h, w_lin, preferred_element_type=f32) + b_lin
    o_ref[...] = out.astype(o_ref.dtype)     # lane-dense (128-wide) store


# ------------------------------ Param handling --------------------------------

def init_params(key, in_channels, hidden_channels, out_channels, num_layers=2):
    params = {"gcn": [], "lin": None}
    dims = [in_channels] + [hidden_channels] * num_layers
    for i in range(num_layers):
        key, kw = jax.random.split(key)
        c_in, c_out = dims[i], dims[i + 1]
        w = jax.random.normal(kw, (c_in, c_out), jnp.float32) * (1.0 / jnp.sqrt(c_in))
        b = jnp.zeros((c_out,), jnp.float32)
        params["gcn"].append((w, b))
    key, kw, kb = jax.random.split(key, 3)
    bound = 1.0 / jnp.sqrt(hidden_channels)
    w = jax.random.uniform(kw, (hidden_channels, out_channels), jnp.float32, -bound, bound)
    b = jax.random.uniform(kb, (out_channels,), jnp.float32, -bound, bound)
    params["lin"] = (w, b)
    return params


def pack_params(params):
    """One-time packing of all weights/biases into two lane-dense f32 slabs.

    Runs once at init time so the per-call path has no pad/convert XLA ops.
    Each weight segment starts on a sublane-multiple row of the slab.
    """
    gcn = params["gcn"]
    w_lin, b_lin = params["lin"]
    hidden, out_channels = w_lin.shape

    gcn_layers = []
    r = 0
    for (w, _) in gcn:
        c_in, c_out = w.shape
        gcn_layers.append((r, c_in, c_out))
        r = _round_up(r + c_in, SUBLANE)
    lin_r0 = r
    r = _round_up(r + hidden, SUBLANE)
    w_rows = r

    max_cout = max([c for (_, _, c) in gcn_layers] + [out_channels])
    w_cols = max(_round_up(max_cout, LANE), LANE)            # lane-dense: 128

    w_slab = jnp.zeros((w_rows, w_cols), jnp.float32)
    for (w, _), (r0, c_in, c_out) in zip(gcn, gcn_layers):
        w_slab = w_slab.at[r0:r0 + c_in, 0:c_out].set(w)
    w_slab = w_slab.at[lin_r0:lin_r0 + hidden, 0:out_channels].set(w_lin)

    b_rows = max(_round_up(len(gcn) + 1, SUBLANE), SUBLANE)
    b_slab = jnp.zeros((b_rows, w_cols), jnp.float32)
    for i, (_, b) in enumerate(gcn):
        b_slab = b_slab.at[i, 0:b.shape[0]].set(b)
    b_slab = b_slab.at[len(gcn), 0:b_lin.shape[0]].set(b_lin)

    meta = {
        "gcn_layers": tuple(gcn_layers),
        "lin_layer": (lin_r0, hidden, w_cols),
        "out_channels": out_channels,
        "out_pad": w_cols,
    }
    return jax.device_put(w_slab), jax.device_put(b_slab), meta


# ------------------------------ Forward wrapper -------------------------------

def gnn_forward(w_slab, b_slab, meta, x, edge_index):
    n = x.shape[0]
    n_pad = max(_round_up(n, SUBLANE), SUBLANE)
    if n_pad != n:  # no-op at n=16; padded rows have deg=0 and are sliced off
        x = jnp.zeros((n_pad, x.shape[1]), x.dtype).at[:n, :].set(x)
    out_pad = meta["out_pad"]

    kernel = functools.partial(
        _fused_gnn_kernel,
        num_nodes=n,
        num_edges=edge_index.shape[1],
        n_pad=n_pad,
        gcn_layers=meta["gcn_layers"],
        lin_layer=meta["lin_layer"],
    )
    out_p = pl.pallas_call(
        kernel,
        out_shape=jax.ShapeDtypeStruct((n_pad, out_pad), jnp.float32),
        in_specs=[
            pl.BlockSpec(memory_space=pltpu.MemorySpace.SMEM),   # edge_index
            pl.BlockSpec(x.shape, lambda: (0, 0)),               # node features
            pl.BlockSpec(w_slab.shape, lambda: (0, 0)),          # weight slab
            pl.BlockSpec(b_slab.shape, lambda: (0, 0)),          # bias slab
        ],
        out_specs=pl.BlockSpec((n_pad, out_pad), lambda: (0, 0)),
    )(edge_index.astype(jnp.int32), x.astype(jnp.float32), w_slab, b_slab)
    return out_p[:n, :meta["out_channels"]]


# ------------------------------------ main -------------------------------------

if __name__ == "__main__":
    key = jax.random.PRNGKey(0)

    num_nodes = 16
    in_channels = 4
    hidden_channels = 32
    out_channels = 8
    num_edges = 40
    num_layers = 2

    key, kx, ke, kp = jax.random.split(key, 4)
    x = jax.random.normal(kx, (num_nodes, in_channels), jnp.float32)
    edge_index = jax.random.randint(ke, (2, num_edges), 0, num_nodes, jnp.int32)

    params = init_params(kp, in_channels, hidden_channels, out_channels, num_layers)
    w_slab, b_slab, meta = pack_params(params)   # one-time, off the per-call path

    fwd = jax.jit(functools.partial(gnn_forward, w_slab, b_slab, meta))
    out = jax.block_until_ready(fwd(x, edge_index))

    assert out.shape == (num_nodes, out_channels)
    assert bool(jnp.all(jnp.isfinite(out)))
    print("KERNEL_OK")
</pallas_src>

<mosaic_0001>
module attributes {stable_mosaic.version = 11 : i64} {
  func.func @_fused_gnn_kernel(%arg0: memref<2x40xi32, #tpu.memory_space<smem>>, %arg1: memref<16x4xf32, #tpu.memory_space<vmem>>, %arg2: memref<72x128xf32, #tpu.memory_space<vmem>>, %arg3: memref<8x128xf32, #tpu.memory_space<vmem>>, %arg4: memref<16x128xf32, #tpu.memory_space<vmem>>) attributes {dimension_semantics = [], scalar_prefetch = 0 : i64, scratch_operands = 0 : i64, tpu.core_type = #tpu.core_type<tc>} {
    %0 = tpu.iota {dimensions = array<i32: 0>} : vector<16x16xi32>
    %1 = tpu.iota {dimensions = array<i32: 1>} : vector<16x16xi32>
    %cst = arith.constant 0.000000e+00 : f32
    %2 = vector.broadcast %cst : f32 to vector<16x16xf32>
    %c0 = arith.constant 0 : index
    %c0_0 = arith.constant 0 : index
    %3 = memref.load %arg0[%c0, %c0_0] : memref<2x40xi32, #tpu.memory_space<smem>>
    %c1 = arith.constant 1 : index
    %c0_1 = arith.constant 0 : index
    %4 = memref.load %arg0[%c1, %c0_1] : memref<2x40xi32, #tpu.memory_space<smem>>
    %5 = vector.broadcast %4 : i32 to vector<16x16xi32>
    %6 = arith.cmpi eq, %0, %5 : vector<16x16xi32>
    %7 = vector.broadcast %3 : i32 to vector<16x16xi32>
    %8 = arith.cmpi eq, %1, %7 : vector<16x16xi32>
    %9 = arith.andi %6, %8 : vector<16x16xi1>
    %10 = arith.extui %9 : vector<16x16xi1> to vector<16x16xi32>
    %11 = arith.sitofp %10 : vector<16x16xi32> to vector<16x16xf32>
    %12 = arith.addf %2, %11 : vector<16x16xf32>
    %c0_2 = arith.constant 0 : index
    %c1_3 = arith.constant 1 : index
    %13 = memref.load %arg0[%c0_2, %c1_3] : memref<2x40xi32, #tpu.memory_space<smem>>
    %c1_4 = arith.constant 1 : index
    %c1_5 = arith.constant 1 : index
    %14 = memref.load %arg0[%c1_4, %c1_5] : memref<2x40xi32, #tpu.memory_space<smem>>
    %15 = vector.broadcast %14 : i32 to vector<16x16xi32>
    %16 = arith.cmpi eq, %0, %15 : vector<16x16xi32>
    %17 = vector.broadcast %13 : i32 to vector<16x16xi32>
    %18 = arith.cmpi eq, %1, %17 : vector<16x16xi32>
    %19 = arith.andi %16, %18 : vector<16x16xi1>
    %20 = arith.extui %19 : vector<16x16xi1> to vector<16x16xi32>
    %21 = arith.sitofp %20 : vector<16x16xi32> to vector<16x16xf32>
    %22 = arith.addf %12, %21 : vector<16x16xf32>
    %c0_6 = arith.constant 0 : index
    %c2 = arith.constant 2 : index
    %23 = memref.load %arg0[%c0_6, %c2] : memref<2x40xi32, #tpu.memory_space<smem>>
    %c1_7 = arith.constant 1 : index
    %c2_8 = arith.constant 2 : index
    %24 = memref.load %arg0[%c1_7, %c2_8] : memref<2x40xi32, #tpu.memory_space<smem>>
    %25 = vector.broadcast %24 : i32 to vector<16x16xi32>
    %26 = arith.cmpi eq, %0, %25 : vector<16x16xi32>
    %27 = vector.broadcast %23 : i32 to vector<16x16xi32>
    %28 = arith.cmpi eq, %1, %27 : vector<16x16xi32>
    %29 = arith.andi %26, %28 : vector<16x16xi1>
    %30 = arith.extui %29 : vector<16x16xi1> to vector<16x16xi32>
    %31 = arith.sitofp %30 : vector<16x16xi32> to vector<16x16xf32>
    %32 = arith.addf %22, %31 : vector<16x16xf32>
    %c0_9 = arith.constant 0 : index
    %c3 = arith.constant 3 : index
    %33 = memref.load %arg0[%c0_9, %c3] : memref<2x40xi32, #tpu.memory_space<smem>>
    %c1_10 = arith.constant 1 : index
    %c3_11 = arith.constant 3 : index
    %34 = memref.load %arg0[%c1_10, %c3_11] : memref<2x40xi32, #tpu.memory_space<smem>>
    %35 = vector.broadcast %34 : i32 to vector<16x16xi32>
    %36 = arith.cmpi eq, %0, %35 : vector<16x16xi32>
    %37 = vector.broadcast %33 : i32 to vector<16x16xi32>
    %38 = arith.cmpi eq, %1, %37 : vector<16x16xi32>
    %39 = arith.andi %36, %38 : vector<16x16xi1>
    %40 = arith.extui %39 : vector<16x16xi1> to vector<16x16xi32>
    %41 = arith.sitofp %40 : vector<16x16xi32> to vector<16x16xf32>
    %42 = arith.addf %32, %41 : vector<16x16xf32>
    %c0_12 = arith.constant 0 : index
    %c4 = arith.constant 4 : index
    %43 = memref.load %arg0[%c0_12, %c4] : memref<2x40xi32, #tpu.memory_space<smem>>
    %c1_13 = arith.constant 1 : index
    %c4_14 = arith.constant 4 : index
    %44 = memref.load %arg0[%c1_13, %c4_14] : memref<2x40xi32, #tpu.memory_space<smem>>
    %45 = vector.broadcast %44 : i32 to vector<16x16xi32>
    %46 = arith.cmpi eq, %0, %45 : vector<16x16xi32>
    %47 = vector.broadcast %43 : i32 to vector<16x16xi32>
    %48 = arith.cmpi eq, %1, %47 : vector<16x16xi32>
    %49 = arith.andi %46, %48 : vector<16x16xi1>
    %50 = arith.extui %49 : vector<16x16xi1> to vector<16x16xi32>
    %51 = arith.sitofp %50 : vector<16x16xi32> to vector<16x16xf32>
    %52 = arith.addf %42, %51 : vector<16x16xf32>
    %c0_15 = arith.constant 0 : index
    %c5 = arith.constant 5 : index
    %53 = memref.load %arg0[%c0_15, %c5] : memref<2x40xi32, #tpu.memory_space<smem>>
    %c1_16 = arith.constant 1 : index
    %c5_17 = arith.constant 5 : index
    %54 = memref.load %arg0[%c1_16, %c5_17] : memref<2x40xi32, #tpu.memory_space<smem>>
    %55 = vector.broadcast %54 : i32 to vector<16x16xi32>
    %56 = arith.cmpi eq, %0, %55 : vector<16x16xi32>
    %57 = vector.broadcast %53 : i32 to vector<16x16xi32>
    %58 = arith.cmpi eq, %1, %57 : vector<16x16xi32>
    %59 = arith.andi %56, %58 : vector<16x16xi1>
    %60 = arith.extui %59 : vector<16x16xi1> to vector<16x16xi32>
    %61 = arith.sitofp %60 : vector<16x16xi32> to vector<16x16xf32>
    %62 = arith.addf %52, %61 : vector<16x16xf32>
    %c0_18 = arith.constant 0 : index
    %c6 = arith.constant 6 : index
    %63 = memref.load %arg0[%c0_18, %c6] : memref<2x40xi32, #tpu.memory_space<smem>>
    %c1_19 = arith.constant 1 : index
    %c6_20 = arith.constant 6 : index
    %64 = memref.load %arg0[%c1_19, %c6_20] : memref<2x40xi32, #tpu.memory_space<smem>>
    %65 = vector.broadcast %64 : i32 to vector<16x16xi32>
    %66 = arith.cmpi eq, %0, %65 : vector<16x16xi32>
    %67 = vector.broadcast %63 : i32 to vector<16x16xi32>
    %68 = arith.cmpi eq, %1, %67 : vector<16x16xi32>
    %69 = arith.andi %66, %68 : vector<16x16xi1>
    %70 = arith.extui %69 : vector<16x16xi1> to vector<16x16xi32>
    %71 = arith.sitofp %70 : vector<16x16xi32> to vector<16x16xf32>
    %72 = arith.addf %62, %71 : vector<16x16xf32>
    %c0_21 = arith.constant 0 : index
    %c7 = arith.constant 7 : index
    %73 = memref.load %arg0[%c0_21, %c7] : memref<2x40xi32, #tpu.memory_space<smem>>
    %c1_22 = arith.constant 1 : index
    %c7_23 = arith.constant 7 : index
    %74 = memref.load %arg0[%c1_22, %c7_23] : memref<2x40xi32, #tpu.memory_space<smem>>
    %75 = vector.broadcast %74 : i32 to vector<16x16xi32>
    %76 = arith.cmpi eq, %0, %75 : vector<16x16xi32>
    %77 = vector.broadcast %73 : i32 to vector<16x16xi32>
    %78 = arith.cmpi eq, %1, %77 : vector<16x16xi32>
    %79 = arith.andi %76, %78 : vector<16x16xi1>
    %80 = arith.extui %79 : vector<16x16xi1> to vector<16x16xi32>
    %81 = arith.sitofp %80 : vector<16x16xi32> to vector<16x16xf32>
    %82 = arith.addf %72, %81 : vector<16x16xf32>
    %c0_24 = arith.constant 0 : index
    %c8 = arith.constant 8 : index
    %83 = memref.load %arg0[%c0_24, %c8] : memref<2x40xi32, #tpu.memory_space<smem>>
    %c1_25 = arith.constant 1 : index
    %c8_26 = arith.constant 8 : index
    %84 = memref.load %arg0[%c1_25, %c8_26] : memref<2x40xi32, #tpu.memory_space<smem>>
    %85 = vector.broadcast %84 : i32 to vector<16x16xi32>
    %86 = arith.cmpi eq, %0, %85 : vector<16x16xi32>
    %87 = vector.broadcast %83 : i32 to vector<16x16xi32>
    %88 = arith.cmpi eq, %1, %87 : vector<16x16xi32>
    %89 = arith.andi %86, %88 : vector<16x16xi1>
    %90 = arith.extui %89 : vector<16x16xi1> to vector<16x16xi32>
    %91 = arith.sitofp %90 : vector<16x16xi32> to vector<16x16xf32>
    %92 = arith.addf %82, %91 : vector<16x16xf32>
    %c0_27 = arith.constant 0 : index
    %c9 = arith.constant 9 : index
    %93 = memref.load %arg0[%c0_27, %c9] : memref<2x40xi32, #tpu.memory_space<smem>>
    %c1_28 = arith.constant 1 : index
    %c9_29 = arith.constant 9 : index
    %94 = memref.load %arg0[%c1_28, %c9_29] : memref<2x40xi32, #tpu.memory_space<smem>>
    %95 = vector.broadcast %94 : i32 to vector<16x16xi32>
    %96 = arith.cmpi eq, %0, %95 : vector<16x16xi32>
    %97 = vector.broadcast %93 : i32 to vector<16x16xi32>
    %98 = arith.cmpi eq, %1, %97 : vector<16x16xi32>
    %99 = arith.andi %96, %98 : vector<16x16xi1>
    %100 = arith.extui %99 : vector<16x16xi1> to vector<16x16xi32>
    %101 = arith.sitofp %100 : vector<16x16xi32> to vector<16x16xf32>
    %102 = arith.addf %92, %101 : vector<16x16xf32>
    %c0_30 = arith.constant 0 : index
    %c10 = arith.constant 10 : index
    %103 = memref.load %arg0[%c0_30, %c10] : memref<2x40xi32, #tpu.memory_space<smem>>
    %c1_31 = arith.constant 1 : index
    %c10_32 = arith.constant 10 : index
    %104 = memref.load %arg0[%c1_31, %c10_32] : memref<2x40xi32, #tpu.memory_space<smem>>
    %105 = vector.broadcast %104 : i32 to vector<16x16xi32>
    %106 = arith.cmpi eq, %0, %105 : vector<16x16xi32>
    %107 = vector.broadcast %103 : i32 to vector<16x16xi32>
    %108 = arith.cmpi eq, %1, %107 : vector<16x16xi32>
    %109 = arith.andi %106, %108 : vector<16x16xi1>
    %110 = arith.extui %109 : vector<16x16xi1> to vector<16x16xi32>
    %111 = arith.sitofp %110 : vector<16x16xi32> to vector<16x16xf32>
    %112 = arith.addf %102, %111 : vector<16x16xf32>
    %c0_33 = arith.constant 0 : index
    %c11 = arith.constant 11 : index
    %113 = memref.load %arg0[%c0_33, %c11] : memref<2x40xi32, #tpu.memory_space<smem>>
    %c1_34 = arith.constant 1 : index
    %c11_35 = arith.constant 11 : index
    %114 = memref.load %arg0[%c1_34, %c11_35] : memref<2x40xi32, #tpu.memory_space<smem>>
    %115 = vector.broadcast %114 : i32 to vector<16x16xi32>
    %116 = arith.cmpi eq, %0, %115 : vector<16x16xi32>
    %117 = vector.broadcast %113 : i32 to vector<16x16xi32>
    %118 = arith.cmpi eq, %1, %117 : vector<16x16xi32>
    %119 = arith.andi %116, %118 : vector<16x16xi1>
    %120 = arith.extui %119 : vector<16x16xi1> to vector<16x16xi32>
    %121 = arith.sitofp %120 : vector<16x16xi32> to vector<16x16xf32>
    %122 = arith.addf %112, %121 : vector<16x16xf32>
    %c0_36 = arith.constant 0 : index
    %c12 = arith.constant 12 : index
    %123 = memref.load %arg0[%c0_36, %c12] : memref<2x40xi32, #tpu.memory_space<smem>>
    %c1_37 = arith.constant 1 : index
    %c12_38 = arith.constant 12 : index
    %124 = memref.load %arg0[%c1_37, %c12_38] : memref<2x40xi32, #tpu.memory_space<smem>>
    %125 = vector.broadcast %124 : i32 to vector<16x16xi32>
    %126 = arith.cmpi eq, %0, %125 : vector<16x16xi32>
    %127 = vector.broadcast %123 : i32 to vector<16x16xi32>
    %128 = arith.cmpi eq, %1, %127 : vector<16x16xi32>
    %129 = arith.andi %126, %128 : vector<16x16xi1>
    %130 = arith.extui %129 : vector<16x16xi1> to vector<16x16xi32>
    %131 = arith.sitofp %130 : vector<16x16xi32> to vector<16x16xf32>
    %132 = arith.addf %122, %131 : vector<16x16xf32>
    %c0_39 = arith.constant 0 : index
    %c13 = arith.constant 13 : index
    %133 = memref.load %arg0[%c0_39, %c13] : memref<2x40xi32, #tpu.memory_space<smem>>
    %c1_40 = arith.constant 1 : index
    %c13_41 = arith.constant 13 : index
    %134 = memref.load %arg0[%c1_40, %c13_41] : memref<2x40xi32, #tpu.memory_space<smem>>
    %135 = vector.broadcast %134 : i32 to vector<16x16xi32>
    %136 = arith.cmpi eq, %0, %135 : vector<16x16xi32>
    %137 = vector.broadcast %133 : i32 to vector<16x16xi32>
    %138 = arith.cmpi eq, %1, %137 : vector<16x16xi32>
    %139 = arith.andi %136, %138 : vector<16x16xi1>
    %140 = arith.extui %139 : vector<16x16xi1> to vector<16x16xi32>
    %141 = arith.sitofp %140 : vector<16x16xi32> to vector<16x16xf32>
    %142 = arith.addf %132, %141 : vector<16x16xf32>
    %c0_42 = arith.constant 0 : index
    %c14 = arith.constant 14 : index
    %143 = memref.load %arg0[%c0_42, %c14] : memref<2x40xi32, #tpu.memory_space<smem>>
    %c1_43 = arith.constant 1 : index
    %c14_44 = arith.constant 14 : index
    %144 = memref.load %arg0[%c1_43, %c14_44] : memref<2x40xi32, #tpu.memory_space<smem>>
    %145 = vector.broadcast %144 : i32 to vector<16x16xi32>
    %146 = arith.cmpi eq, %0, %145 : vector<16x16xi32>
    %147 = vector.broadcast %143 : i32 to vector<16x16xi32>
    %148 = arith.cmpi eq, %1, %147 : vector<16x16xi32>
    %149 = arith.andi %146, %148 : vector<16x16xi1>
    %150 = arith.extui %149 : vector<16x16xi1> to vector<16x16xi32>
    %151 = arith.sitofp %150 : vector<16x16xi32> to vector<16x16xf32>
    %152 = arith.addf %142, %151 : vector<16x16xf32>
    %c0_45 = arith.constant 0 : index
    %c15 = arith.constant 15 : index
    %153 = memref.load %arg0[%c0_45, %c15] : memref<2x40xi32, #tpu.memory_space<smem>>
    %c1_46 = arith.constant 1 : index
    %c15_47 = arith.constant 15 : index
    %154 = memref.load %arg0[%c1_46, %c15_47] : memref<2x40xi32, #tpu.memory_space<smem>>
    %155 = vector.broadcast %154 : i32 to vector<16x16xi32>
    %156 = arith.cmpi eq, %0, %155 : vector<16x16xi32>
    %157 = vector.broadcast %153 : i32 to vector<16x16xi32>
    %158 = arith.cmpi eq, %1, %157 : vector<16x16xi32>
    %159 = arith.andi %156, %158 : vector<16x16xi1>
    %160 = arith.extui %159 : vector<16x16xi1> to vector<16x16xi32>
    %161 = arith.sitofp %160 : vector<16x16xi32> to vector<16x16xf32>
    %162 = arith.addf %152, %161 : vector<16x16xf32>
    %c0_48 = arith.constant 0 : index
    %c16 = arith.constant 16 : index
    %163 = memref.load %arg0[%c0_48, %c16] : memref<2x40xi32, #tpu.memory_space<smem>>
    %c1_49 = arith.constant 1 : index
    %c16_50 = arith.constant 16 : index
    %164 = memref.load %arg0[%c1_49, %c16_50] : memref<2x40xi32, #tpu.memory_space<smem>>
    %165 = vector.broadcast %164 : i32 to vector<16x16xi32>
    %166 = arith.cmpi eq, %0, %165 : vector<16x16xi32>
    %167 = vector.broadcast %163 : i32 to vector<16x16xi32>
    %168 = arith.cmpi eq, %1, %167 : vector<16x16xi32>
    %169 = arith.andi %166, %168 : vector<16x16xi1>
    %170 = arith.extui %169 : vector<16x16xi1> to vector<16x16xi32>
    %171 = arith.sitofp %170 : vector<16x16xi32> to vector<16x16xf32>
    %172 = arith.addf %162, %171 : vector<16x16xf32>
    %c0_51 = arith.constant 0 : index
    %c17 = arith.constant 17 : index
    %173 = memref.load %arg0[%c0_51, %c17] : memref<2x40xi32, #tpu.memory_space<smem>>
    %c1_52 = arith.constant 1 : index
    %c17_53 = arith.constant 17 : index
    %174 = memref.load %arg0[%c1_52, %c17_53] : memref<2x40xi32, #tpu.memory_space<smem>>
    %175 = vector.broadcast %174 : i32 to vector<16x16xi32>
    %176 = arith.cmpi eq, %0, %175 : vector<16x16xi32>
    %177 = vector.broadcast %173 : i32 to vector<16x16xi32>
    %178 = arith.cmpi eq, %1, %177 : vector<16x16xi32>
    %179 = arith.andi %176, %178 : vector<16x16xi1>
    %180 = arith.extui %179 : vector<16x16xi1> to vector<16x16xi32>
    %181 = arith.sitofp %180 : vector<16x16xi32> to vector<16x16xf32>
    %182 = arith.addf %172, %181 : vector<16x16xf32>
    %c0_54 = arith.constant 0 : index
    %c18 = arith.constant 18 : index
    %183 = memref.load %arg0[%c0_54, %c18] : memref<2x40xi32, #tpu.memory_space<smem>>
    %c1_55 = arith.constant 1 : index
    %c18_56 = arith.constant 18 : index
    %184 = memref.load %arg0[%c1_55, %c18_56] : memref<2x40xi32, #tpu.memory_space<smem>>
    %185 = vector.broadcast %184 : i32 to vector<16x16xi32>
    %186 = arith.cmpi eq, %0, %185 : vector<16x16xi32>
    %187 = vector.broadcast %183 : i32 to vector<16x16xi32>
    %188 = arith.cmpi eq, %1, %187 : vector<16x16xi32>
    %189 = arith.andi %186, %188 : vector<16x16xi1>
    %190 = arith.extui %189 : vector<16x16xi1> to vector<16x16xi32>
    %191 = arith.sitofp %190 : vector<16x16xi32> to vector<16x16xf32>
    %192 = arith.addf %182, %191 : vector<16x16xf32>
    %c0_57 = arith.constant 0 : index
    %c19 = arith.constant 19 : index
    %193 = memref.load %arg0[%c0_57, %c19] : memref<2x40xi32, #tpu.memory_space<smem>>
    %c1_58 = arith.constant 1 : index
    %c19_59 = arith.constant 19 : index
    %194 = memref.load %arg0[%c1_58, %c19_59] : memref<2x40xi32, #tpu.memory_space<smem>>
    %195 = vector.broadcast %194 : i32 to vector<16x16xi32>
    %196 = arith.cmpi eq, %0, %195 : vector<16x16xi32>
    %197 = vector.broadcast %193 : i32 to vector<16x16xi32>
    %198 = arith.cmpi eq, %1, %197 : vector<16x16xi32>
    %199 = arith.andi %196, %198 : vector<16x16xi1>
    %200 = arith.extui %199 : vector<16x16xi1> to vector<16x16xi32>
    %201 = arith.sitofp %200 : vector<16x16xi32> to vector<16x16xf32>
    %202 = arith.addf %192, %201 : vector<16x16xf32>
    %c0_60 = arith.constant 0 : index
    %c20 = arith.constant 20 : index
    %203 = memref.load %arg0[%c0_60, %c20] : memref<2x40xi32, #tpu.memory_space<smem>>
    %c1_61 = arith.constant 1 : index
    %c20_62 = arith.constant 20 : index
    %204 = memref.load %arg0[%c1_61, %c20_62] : memref<2x40xi32, #tpu.memory_space<smem>>
    %205 = vector.broadcast %204 : i32 to vector<16x16xi32>
    %206 = arith.cmpi eq, %0, %205 : vector<16x16xi32>
    %207 = vector.broadcast %203 : i32 to vector<16x16xi32>
    %208 = arith.cmpi eq, %1, %207 : vector<16x16xi32>
    %209 = arith.andi %206, %208 : vector<16x16xi1>
    %210 = arith.extui %209 : vector<16x16xi1> to vector<16x16xi32>
    %211 = arith.sitofp %210 : vector<16x16xi32> to vector<16x16xf32>
    %212 = arith.addf %202, %211 : vector<16x16xf32>
    %c0_63 = arith.constant 0 : index
    %c21 = arith.constant 21 : index
    %213 = memref.load %arg0[%c0_63, %c21] : memref<2x40xi32, #tpu.memory_space<smem>>
    %c1_64 = arith.constant 1 : index
    %c21_65 = arith.constant 21 : index
    %214 = memref.load %arg0[%c1_64, %c21_65] : memref<2x40xi32, #tpu.memory_space<smem>>
    %215 = vector.broadcast %214 : i32 to vector<16x16xi32>
    %216 = arith.cmpi eq, %0, %215 : vector<16x16xi32>
    %217 = vector.broadcast %213 : i32 to vector<16x16xi32>
    %218 = arith.cmpi eq, %1, %217 : vector<16x16xi32>
    %219 = arith.andi %216, %218 : vector<16x16xi1>
    %220 = arith.extui %219 : vector<16x16xi1> to vector<16x16xi32>
    %221 = arith.sitofp %220 : vector<16x16xi32> to vector<16x16xf32>
    %222 = arith.addf %212, %221 : vector<16x16xf32>
    %c0_66 = arith.constant 0 : index
    %c22 = arith.constant 22 : index
    %223 = memref.load %arg0[%c0_66, %c22] : memref<2x40xi32, #tpu.memory_space<smem>>
    %c1_67 = arith.constant 1 : index
    %c22_68 = arith.constant 22 : index
    %224 = memref.load %arg0[%c1_67, %c22_68] : memref<2x40xi32, #tpu.memory_space<smem>>
    %225 = vector.broadcast %224 : i32 to vector<16x16xi32>
    %226 = arith.cmpi eq, %0, %225 : vector<16x16xi32>
    %227 = vector.broadcast %223 : i32 to vector<16x16xi32>
    %228 = arith.cmpi eq, %1, %227 : vector<16x16xi32>
    %229 = arith.andi %226, %228 : vector<16x16xi1>
    %230 = arith.extui %229 : vector<16x16xi1> to vector<16x16xi32>
    %231 = arith.sitofp %230 : vector<16x16xi32> to vector<16x16xf32>
    %232 = arith.addf %222, %231 : vector<16x16xf32>
    %c0_69 = arith.constant 0 : index
    %c23 = arith.constant 23 : index
    %233 = memref.load %arg0[%c0_69, %c23] : memref<2x40xi32, #tpu.memory_space<smem>>
    %c1_70 = arith.constant 1 : index
    %c23_71 = arith.constant 23 : index
    %234 = memref.load %arg0[%c1_70, %c23_71] : memref<2x40xi32, #tpu.memory_space<smem>>
    %235 = vector.broadcast %234 : i32 to vector<16x16xi32>
    %236 = arith.cmpi eq, %0, %235 : vector<16x16xi32>
    %237 = vector.broadcast %233 : i32 to vector<16x16xi32>
    %238 = arith.cmpi eq, %1, %237 : vector<16x16xi32>
    %239 = arith.andi %236, %238 : vector<16x16xi1>
    %240 = arith.extui %239 : vector<16x16xi1> to vector<16x16xi32>
    %241 = arith.sitofp %240 : vector<16x16xi32> to vector<16x16xf32>
    %242 = arith.addf %232, %241 : vector<16x16xf32>
    %c0_72 = arith.constant 0 : index
    %c24 = arith.constant 24 : index
    %243 = memref.load %arg0[%c0_72, %c24] : memref<2x40xi32, #tpu.memory_space<smem>>
    %c1_73 = arith.constant 1 : index
    %c24_74 = arith.constant 24 : index
    %244 = memref.load %arg0[%c1_73, %c24_74] : memref<2x40xi32, #tpu.memory_space<smem>>
    %245 = vector.broadcast %244 : i32 to vector<16x16xi32>
    %246 = arith.cmpi eq, %0, %245 : vector<16x16xi32>
    %247 = vector.broadcast %243 : i32 to vector<16x16xi32>
    %248 = arith.cmpi eq, %1, %247 : vector<16x16xi32>
    %249 = arith.andi %246, %248 : vector<16x16xi1>
    %250 = arith.extui %249 : vector<16x16xi1> to vector<16x16xi32>
    %251 = arith.sitofp %250 : vector<16x16xi32> to vector<16x16xf32>
    %252 = arith.addf %242, %251 : vector<16x16xf32>
    %c0_75 = arith.constant 0 : index
    %c25 = arith.constant 25 : index
    %253 = memref.load %arg0[%c0_75, %c25] : memref<2x40xi32, #tpu.memory_space<smem>>
    %c1_76 = arith.constant 1 : index
    %c25_77 = arith.constant 25 : index
    %254 = memref.load %arg0[%c1_76, %c25_77] : memref<2x40xi32, #tpu.memory_space<smem>>
    %255 = vector.broadcast %254 : i32 to vector<16x16xi32>
    %256 = arith.cmpi eq, %0, %255 : vector<16x16xi32>
    %257 = vector.broadcast %253 : i32 to vector<16x16xi32>
    %258 = arith.cmpi eq, %1, %257 : vector<16x16xi32>
    %259 = arith.andi %256, %258 : vector<16x16xi1>
    %260 = arith.extui %259 : vector<16x16xi1> to vector<16x16xi32>
    %261 = arith.sitofp %260 : vector<16x16xi32> to vector<16x16xf32>
    %262 = arith.addf %252, %261 : vector<16x16xf32>
    %c0_78 = arith.constant 0 : index
    %c26 = arith.constant 26 : index
    %263 = memref.load %arg0[%c0_78, %c26] : memref<2x40xi32, #tpu.memory_space<smem>>
    %c1_79 = arith.constant 1 : index
    %c26_80 = arith.constant 26 : index
    %264 = memref.load %arg0[%c1_79, %c26_80] : memref<2x40xi32, #tpu.memory_space<smem>>
    %265 = vector.broadcast %264 : i32 to vector<16x16xi32>
    %266 = arith.cmpi eq, %0, %265 : vector<16x16xi32>
    %267 = vector.broadcast %263 : i32 to vector<16x16xi32>
    %268 = arith.cmpi eq, %1, %267 : vector<16x16xi32>
    %269 = arith.andi %266, %268 : vector<16x16xi1>
    %270 = arith.extui %269 : vector<16x16xi1> to vector<16x16xi32>
    %271 = arith.sitofp %270 : vector<16x16xi32> to vector<16x16xf32>
    %272 = arith.addf %262, %271 : vector<16x16xf32>
    %c0_81 = arith.constant 0 : index
    %c27 = arith.constant 27 : index
    %273 = memref.load %arg0[%c0_81, %c27] : memref<2x40xi32, #tpu.memory_space<smem>>
    %c1_82 = arith.constant 1 : index
    %c27_83 = arith.constant 27 : index
    %274 = memref.load %arg0[%c1_82, %c27_83] : memref<2x40xi32, #tpu.memory_space<smem>>
    %275 = vector.broadcast %274 : i32 to vector<16x16xi32>
    %276 = arith.cmpi eq, %0, %275 : vector<16x16xi32>
    %277 = vector.broadcast %273 : i32 to vector<16x16xi32>
    %278 = arith.cmpi eq, %1, %277 : vector<16x16xi32>
    %279 = arith.andi %276, %278 : vector<16x16xi1>
    %280 = arith.extui %279 : vector<16x16xi1> to vector<16x16xi32>
    %281 = arith.sitofp %280 : vector<16x16xi32> to vector<16x16xf32>
    %282 = arith.addf %272, %281 : vector<16x16xf32>
    %c0_84 = arith.constant 0 : index
    %c28 = arith.constant 28 : index
    %283 = memref.load %arg0[%c0_84, %c28] : memref<2x40xi32, #tpu.memory_space<smem>>
    %c1_85 = arith.constant 1 : index
    %c28_86 = arith.constant 28 : index
    %284 = memref.load %arg0[%c1_85, %c28_86] : memref<2x40xi32, #tpu.memory_space<smem>>
    %285 = vector.broadcast %284 : i32 to vector<16x16xi32>
    %286 = arith.cmpi eq, %0, %285 : vector<16x16xi32>
    %287 = vector.broadcast %283 : i32 to vector<16x16xi32>
    %288 = arith.cmpi eq, %1, %287 : vector<16x16xi32>
    %289 = arith.andi %286, %288 : vector<16x16xi1>
    %290 = arith.extui %289 : vector<16x16xi1> to vector<16x16xi32>
    %291 = arith.sitofp %290 : vector<16x16xi32> to vector<16x16xf32>
    %292 = arith.addf %282, %291 : vector<16x16xf32>
    %c0_87 = arith.constant 0 : index
    %c29 = arith.constant 29 : index
    %293 = memref.load %arg0[%c0_87, %c29] : memref<2x40xi32, #tpu.memory_space<smem>>
    %c1_88 = arith.constant 1 : index
    %c29_89 = arith.constant 29 : index
    %294 = memref.load %arg0[%c1_88, %c29_89] : memref<2x40xi32, #tpu.memory_space<smem>>
    %295 = vector.broadcast %294 : i32 to vector<16x16xi32>
    %296 = arith.cmpi eq, %0, %295 : vector<16x16xi32>
    %297 = vector.broadcast %293 : i32 to vector<16x16xi32>
    %298 = arith.cmpi eq, %1, %297 : vector<16x16xi32>
    %299 = arith.andi %296, %298 : vector<16x16xi1>
    %300 = arith.extui %299 : vector<16x16xi1> to vector<16x16xi32>
    %301 = arith.sitofp %300 : vector<16x16xi32> to vector<16x16xf32>
    %302 = arith.addf %292, %301 : vector<16x16xf32>
    %c0_90 = arith.constant 0 : index
    %c30 = arith.constant 30 : index
    %303 = memref.load %arg0[%c0_90, %c30] : memref<2x40xi32, #tpu.memory_space<smem>>
    %c1_91 = arith.constant 1 : index
    %c30_92 = arith.constant 30 : index
    %304 = memref.load %arg0[%c1_91, %c30_92] : memref<2x40xi32, #tpu.memory_space<smem>>
    %305 = vector.broadcast %304 : i32 to vector<16x16xi32>
    %306 = arith.cmpi eq, %0, %305 : vector<16x16xi32>
    %307 = vector.broadcast %303 : i32 to vector<16x16xi32>
    %308 = arith.cmpi eq, %1, %307 : vector<16x16xi32>
    %309 = arith.andi %306, %308 : vector<16x16xi1>
    %310 = arith.extui %309 : vector<16x16xi1> to vector<16x16xi32>
    %311 = arith.sitofp %310 : vector<16x16xi32> to vector<16x16xf32>
    %312 = arith.addf %302, %311 : vector<16x16xf32>
    %c0_93 = arith.constant 0 : index
    %c31 = arith.constant 31 : index
    %313 = memref.load %arg0[%c0_93, %c31] : memref<2x40xi32, #tpu.memory_space<smem>>
    %c1_94 = arith.constant 1 : index
    %c31_95 = arith.constant 31 : index
    %314 = memref.load %arg0[%c1_94, %c31_95] : memref<2x40xi32, #tpu.memory_space<smem>>
    %315 = vector.broadcast %314 : i32 to vector<16x16xi32>
    %316 = arith.cmpi eq, %0, %315 : vector<16x16xi32>
    %317 = vector.broadcast %313 : i32 to vector<16x16xi32>
    %318 = arith.cmpi eq, %1, %317 : vector<16x16xi32>
    %319 = arith.andi %316, %318 : vector<16x16xi1>
    %320 = arith.extui %319 : vector<16x16xi1> to vector<16x16xi32>
    %321 = arith.sitofp %320 : vector<16x16xi32> to vector<16x16xf32>
    %322 = arith.addf %312, %321 : vector<16x16xf32>
    %c0_96 = arith.constant 0 : index
    %c32 = arith.constant 32 : index
    %323 = memref.load %arg0[%c0_96, %c32] : memref<2x40xi32, #tpu.memory_space<smem>>
    %c1_97 = arith.constant 1 : index
    %c32_98 = arith.constant 32 : index
    %324 = memref.load %arg0[%c1_97, %c32_98] : memref<2x40xi32, #tpu.memory_space<smem>>
    %325 = vector.broadcast %324 : i32 to vector<16x16xi32>
    %326 = arith.cmpi eq, %0, %325 : vector<16x16xi32>
    %327 = vector.broadcast %323 : i32 to vector<16x16xi32>
    %328 = arith.cmpi eq, %1, %327 : vector<16x16xi32>
    %329 = arith.andi %326, %328 : vector<16x16xi1>
    %330 = arith.extui %329 : vector<16x16xi1> to vector<16x16xi32>
    %331 = arith.sitofp %330 : vector<16x16xi32> to vector<16x16xf32>
    %332 = arith.addf %322, %331 : vector<16x16xf32>
    %c0_99 = arith.constant 0 : index
    %c33 = arith.constant 33 : index
    %333 = memref.load %arg0[%c0_99, %c33] : memref<2x40xi32, #tpu.memory_space<smem>>
    %c1_100 = arith.constant 1 : index
    %c33_101 = arith.constant 33 : index
    %334 = memref.load %arg0[%c1_100, %c33_101] : memref<2x40xi32, #tpu.memory_space<smem>>
    %335 = vector.broadcast %334 : i32 to vector<16x16xi32>
    %336 = arith.cmpi eq, %0, %335 : vector<16x16xi32>
    %337 = vector.broadcast %333 : i32 to vector<16x16xi32>
    %338 = arith.cmpi eq, %1, %337 : vector<16x16xi32>
    %339 = arith.andi %336, %338 : vector<16x16xi1>
    %340 = arith.extui %339 : vector<16x16xi1> to vector<16x16xi32>
    %341 = arith.sitofp %340 : vector<16x16xi32> to vector<16x16xf32>
    %342 = arith.addf %332, %341 : vector<16x16xf32>
    %c0_102 = arith.constant 0 : index
    %c34 = arith.constant 34 : index
    %343 = memref.load %arg0[%c0_102, %c34] : memref<2x40xi32, #tpu.memory_space<smem>>
    %c1_103 = arith.constant 1 : index
    %c34_104 = arith.constant 34 : index
    %344 = memref.load %arg0[%c1_103, %c34_104] : memref<2x40xi32, #tpu.memory_space<smem>>
    %345 = vector.broadcast %344 : i32 to vector<16x16xi32>
    %346 = arith.cmpi eq, %0, %345 : vector<16x16xi32>
    %347 = vector.broadcast %343 : i32 to vector<16x16xi32>
    %348 = arith.cmpi eq, %1, %347 : vector<16x16xi32>
    %349 = arith.andi %346, %348 : vector<16x16xi1>
    %350 = arith.extui %349 : vector<16x16xi1> to vector<16x16xi32>
    %351 = arith.sitofp %350 : vector<16x16xi32> to vector<16x16xf32>
    %352 = arith.addf %342, %351 : vector<16x16xf32>
    %c0_105 = arith.constant 0 : index
    %c35 = arith.constant 35 : index
    %353 = memref.load %arg0[%c0_105, %c35] : memref<2x40xi32, #tpu.memory_space<smem>>
    %c1_106 = arith.constant 1 : index
    %c35_107 = arith.constant 35 : index
    %354 = memref.load %arg0[%c1_106, %c35_107] : memref<2x40xi32, #tpu.memory_space<smem>>
    %355 = vector.broadcast %354 : i32 to vector<16x16xi32>
    %356 = arith.cmpi eq, %0, %355 : vector<16x16xi32>
    %357 = vector.broadcast %353 : i32 to vector<16x16xi32>
    %358 = arith.cmpi eq, %1, %357 : vector<16x16xi32>
    %359 = arith.andi %356, %358 : vector<16x16xi1>
    %360 = arith.extui %359 : vector<16x16xi1> to vector<16x16xi32>
    %361 = arith.sitofp %360 : vector<16x16xi32> to vector<16x16xf32>
    %362 = arith.addf %352, %361 : vector<16x16xf32>
    %c0_108 = arith.constant 0 : index
    %c36 = arith.constant 36 : index
    %363 = memref.load %arg0[%c0_108, %c36] : memref<2x40xi32, #tpu.memory_space<smem>>
    %c1_109 = arith.constant 1 : index
    %c36_110 = arith.constant 36 : index
    %364 = memref.load %arg0[%c1_109, %c36_110] : memref<2x40xi32, #tpu.memory_space<smem>>
    %365 = vector.broadcast %364 : i32 to vector<16x16xi32>
    %366 = arith.cmpi eq, %0, %365 : vector<16x16xi32>
    %367 = vector.broadcast %363 : i32 to vector<16x16xi32>
    %368 = arith.cmpi eq, %1, %367 : vector<16x16xi32>
    %369 = arith.andi %366, %368 : vector<16x16xi1>
    %370 = arith.extui %369 : vector<16x16xi1> to vector<16x16xi32>
    %371 = arith.sitofp %370 : vector<16x16xi32> to vector<16x16xf32>
    %372 = arith.addf %362, %371 : vector<16x16xf32>
    %c0_111 = arith.constant 0 : index
    %c37 = arith.constant 37 : index
    %373 = memref.load %arg0[%c0_111, %c37] : memref<2x40xi32, #tpu.memory_space<smem>>
    %c1_112 = arith.constant 1 : index
    %c37_113 = arith.constant 37 : index
    %374 = memref.load %arg0[%c1_112, %c37_113] : memref<2x40xi32, #tpu.memory_space<smem>>
    %375 = vector.broadcast %374 : i32 to vector<16x16xi32>
    %376 = arith.cmpi eq, %0, %375 : vector<16x16xi32>
    %377 = vector.broadcast %373 : i32 to vector<16x16xi32>
    %378 = arith.cmpi eq, %1, %377 : vector<16x16xi32>
    %379 = arith.andi %376, %378 : vector<16x16xi1>
    %380 = arith.extui %379 : vector<16x16xi1> to vector<16x16xi32>
    %381 = arith.sitofp %380 : vector<16x16xi32> to vector<16x16xf32>
    %382 = arith.addf %372, %381 : vector<16x16xf32>
    %c0_114 = arith.constant 0 : index
    %c38 = arith.constant 38 : index
    %383 = memref.load %arg0[%c0_114, %c38] : memref<2x40xi32, #tpu.memory_space<smem>>
    %c1_115 = arith.constant 1 : index
    %c38_116 = arith.constant 38 : index
    %384 = memref.load %arg0[%c1_115, %c38_116] : memref<2x40xi32, #tpu.memory_space<smem>>
    %385 = vector.broadcast %384 : i32 to vector<16x16xi32>
    %386 = arith.cmpi eq, %0, %385 : vector<16x16xi32>
    %387 = vector.broadcast %383 : i32 to vector<16x16xi32>
    %388 = arith.cmpi eq, %1, %387 : vector<16x16xi32>
    %389 = arith.andi %386, %388 : vector<16x16xi1>
    %390 = arith.extui %389 : vector<16x16xi1> to vector<16x16xi32>
    %391 = arith.sitofp %390 : vector<16x16xi32> to vector<16x16xf32>
    %392 = arith.addf %382, %391 : vector<16x16xf32>
    %c0_117 = arith.constant 0 : index
    %c39 = arith.constant 39 : index
    %393 = memref.load %arg0[%c0_117, %c39] : memref<2x40xi32, #tpu.memory_space<smem>>
    %c1_118 = arith.constant 1 : index
    %c39_119 = arith.constant 39 : index
    %394 = memref.load %arg0[%c1_118, %c39_119] : memref<2x40xi32, #tpu.memory_space<smem>>
    %395 = vector.broadcast %394 : i32 to vector<16x16xi32>
    %396 = arith.cmpi eq, %0, %395 : vector<16x16xi32>
    %397 = vector.broadcast %393 : i32 to vector<16x16xi32>
    %398 = arith.cmpi eq, %1, %397 : vector<16x16xi32>
    %399 = arith.andi %396, %398 : vector<16x16xi1>
    %400 = arith.extui %399 : vector<16x16xi1> to vector<16x16xi32>
    %401 = arith.sitofp %400 : vector<16x16xi32> to vector<16x16xf32>
    %402 = arith.addf %392, %401 : vector<16x16xf32>
    %403 = arith.cmpi eq, %0, %1 : vector<16x16xi32>
    %c16_i32 = arith.constant 16 : i32
    %404 = vector.broadcast %c16_i32 : i32 to vector<16x16xi32>
    %405 = arith.cmpi slt, %0, %404 : vector<16x16xi32>
    %406 = arith.andi %403, %405 : vector<16x16xi1>
    %cst_120 = arith.constant 0.000000e+00 : f32
    %407 = vector.broadcast %cst_120 : f32 to vector<16x16xf32>
    %408 = arith.cmpf oeq, %402, %407 : vector<16x16xf32>
    %409 = arith.andi %406, %408 : vector<16x16xi1>
    %cst_121 = arith.constant 1.000000e+00 : f32
    %410 = vector.broadcast %cst_121 : f32 to vector<16x16xf32>
    %411 = arith.select %409, %410, %402 : vector<16x16xi1>, vector<16x16xf32>
    %cst_122 = arith.constant dense<0.000000e+00> : vector<16xf32>
    %412 = vector.multi_reduction <add>, %411, %cst_122 [1] : vector<16x16xf32> to vector<16xf32>
    %413 = vector.shape_cast %412 : vector<16xf32> to vector<16x1xf32>
    %cst_123 = arith.constant 0.000000e+00 : f32
    %414 = vector.broadcast %cst_123 : f32 to vector<16x1xf32>
    %415 = arith.cmpf ogt, %413, %414 : vector<16x1xf32>
    %cst_124 = arith.constant 1.000000e+00 : f32
    %416 = vector.broadcast %cst_124 : f32 to vector<16x1xf32>
    %417 = arith.maximumf %413, %416 : vector<16x1xf32>
    %418 = math.rsqrt %417 : vector<16x1xf32>
    %cst_125 = arith.constant 0.000000e+00 : f32
    %419 = vector.broadcast %cst_125 : f32 to vector<16x1xf32>
    %420 = arith.select %415, %418, %419 : vector<16x1xi1>, vector<16x1xf32>
    %421 = arith.cmpi eq, %0, %1 : vector<16x16xi32>
    %cst_126 = arith.constant 0.000000e+00 : f32
    %422 = vector.shape_cast %420 : vector<16x1xf32> to vector<16x1xf32>
    %423 = vector.broadcast %422 : vector<16x1xf32> to vector<16x16xf32>
    %424 = vector.broadcast %cst_126 : f32 to vector<16x16xf32>
    %425 = arith.select %421, %423, %424 : vector<16x16xi1>, vector<16x16xf32>
    %cst_127 = arith.constant dense<0.000000e+00> : vector<16xf32>
    %426 = vector.multi_reduction <add>, %425, %cst_127 [0] : vector<16x16xf32> to vector<16xf32>
    %427 = vector.shape_cast %426 : vector<16xf32> to vector<1x16xf32>
    %428 = vector.broadcast %420 : vector<16x1xf32> to vector<16x16xf32>
    %429 = arith.mulf %411, %428 : vector<16x16xf32>
    %430 = vector.broadcast %427 : vector<1x16xf32> to vector<16x16xf32>
    %431 = arith.mulf %429, %430 : vector<16x16xf32>
    %c0_128 = arith.constant 0 : index
    %c0_129 = arith.constant 0 : index
    %432 = vector.load %arg1[%c0_128, %c0_129] : memref<16x4xf32, #tpu.memory_space<vmem>>, vector<16x4xf32>
    %c0_130 = arith.constant 0 : index
    %c0_131 = arith.constant 0 : index
    %433 = vector.load %arg2[%c0_130, %c0_131] : memref<72x128xf32, #tpu.memory_space<vmem>>, vector<4x32xf32>
    %c0_132 = arith.constant 0 : index
    %c0_133 = arith.constant 0 : index
    %434 = vector.load %arg3[%c0_132, %c0_133] : memref<8x128xf32, #tpu.memory_space<vmem>>, vector<1x32xf32>
    %cst_134 = arith.constant dense<0.000000e+00> : vector<16x4xf32>
    %435 = tpu.matmul %431, %432, %cst_134 {dimension_numbers = #tpu.dot_dimension_numbers<[1], [0], [0], [1], [0, 0, 1, 1], [], []>} : vector<16x16xf32>, vector<16x4xf32>, vector<16x4xf32> -> vector<16x4xf32>
    %cst_135 = arith.constant dense<0.000000e+00> : vector<16x32xf32>
    %436 = tpu.matmul %435, %433, %cst_135 {dimension_numbers = #tpu.dot_dimension_numbers<[1], [0], [0], [1], [0, 0, 1, 1], [], []>} : vector<16x4xf32>, vector<4x32xf32>, vector<16x32xf32> -> vector<16x32xf32>
    %437 = vector.broadcast %434 : vector<1x32xf32> to vector<16x32xf32>
    %438 = arith.addf %436, %437 : vector<16x32xf32>
    %cst_136 = arith.constant 0.000000e+00 : f32
    %439 = vector.broadcast %cst_136 : f32 to vector<16x32xf32>
    %440 = arith.maximumf %438, %439 : vector<16x32xf32>
    %c8_137 = arith.constant 8 : index
    %c0_138 = arith.constant 0 : index
    %441 = vector.load %arg2[%c8_137, %c0_138] : memref<72x128xf32, #tpu.memory_space<vmem>>, vector<32x32xf32>
    %c1_139 = arith.constant 1 : index
    %c0_140 = arith.constant 0 : index
    %442 = vector.load %arg3[%c1_139, %c0_140] : memref<8x128xf32, #tpu.memory_space<vmem>>, vector<1x32xf32>
    %cst_141 = arith.constant dense<0.000000e+00> : vector<16x32xf32>
    %443 = tpu.matmul %440, %441, %cst_141 {dimension_numbers = #tpu.dot_dimension_numbers<[1], [0], [0], [1], [0, 0, 1, 1], [], []>} : vector<16x32xf32>, vector<32x32xf32>, vector<16x32xf32> -> vector<16x32xf32>
    %cst_142 = arith.constant dense<0.000000e+00> : vector<16x32xf32>
    %444 = tpu.matmul %431, %443, %cst_142 {dimension_numbers = #tpu.dot_dimension_numbers<[1], [0], [0], [1], [0, 0, 1, 1], [], []>} : vector<16x16xf32>, vector<16x32xf32>, vector<16x32xf32> -> vector<16x32xf32>
    %445 = vector.broadcast %442 : vector<1x32xf32> to vector<16x32xf32>
    %446 = arith.addf %444, %445 : vector<16x32xf32>
    %cst_143 = arith.constant 0.000000e+00 : f32
    %447 = vector.broadcast %cst_143 : f32 to vector<16x32xf32>
    %448 = arith.maximumf %446, %447 : vector<16x32xf32>
    %c40 = arith.constant 40 : index
    %c0_144 = arith.constant 0 : index
    %449 = vector.load %arg2[%c40, %c0_144] : memref<72x128xf32, #tpu.memory_space<vmem>>, vector<32x128xf32>
    %c2_145 = arith.constant 2 : index
    %c0_146 = arith.constant 0 : index
    %450 = vector.load %arg3[%c2_145, %c0_146] : memref<8x128xf32, #tpu.memory_space<vmem>>, vector<1x128xf32>
    %cst_147 = arith.constant dense<0.000000e+00> : vector<16x128xf32>
    %451 = tpu.matmul %448, %449, %cst_147 {dimension_numbers = #tpu.dot_dimension_numbers<[1], [0], [0], [1], [0, 0, 1, 1], [], []>} : vector<16x32xf32>, vector<32x128xf32>, vector<16x128xf32> -> vector<16x128xf32>
    %452 = vector.broadcast %450 : vector<1x128xf32> to vector<16x128xf32>
    %453 = arith.addf %451, %452 : vector<16x128xf32>
    %c0_148 = arith.constant 0 : index
    %c0_149 = arith.constant 0 : index
    %454 = vector.load %arg4[%c0_148, %c0_149] : memref<16x128xf32, #tpu.memory_space<vmem>>, vector<16x128xf32>
    tpu.vector_store %arg4[%c0_148, %c0_149], %453 {strides = array<i32>} : memref<16x128xf32, #tpu.memory_space<vmem>>, vector<16x128xf32>,
    return
  }
}

</mosaic_0001>

<llo_original>
// kernel: gnn_forward.1
$region0: #{gnn_forward.1}
  #allocation0 [shape = 'u32[]', space=smem, size = 0x4, offset = 0x4, fixed_abs, tag = 'smem constant byte address 0x4 - core index']
  #allocation1 [shape = 'u32[144,128]{1,0:T(1,128)}', space=vmem, size = 0x12000, scoped, tag = 'internal scratch']
  %s0 = inlined_call_operand.vmem [shape: s32[2,40], index: 0, kind: input, shape index: {}]
  %s1 = inlined_call_operand.vmem [shape: f32[16,4], index: 1, kind: input, shape index: {}]
  %s2 = inlined_call_operand.hbm [shape: f32[72,128], index: 2, kind: input, shape index: {}]
  %s3 = inlined_call_operand.vmem [shape: f32[8,128], index: 3, kind: input, shape index: {}]
  %s4 = inlined_call_operand.vmem [shape: f32[16,128], index: 4, kind: output, shape index: {}]
  %s5 = sld [smem:[#allocation0]]
  $region34: #{gnn_forward.1} parent=0
    _
  %s7 = ssub.s32 1, %s5
  %s8 = scalar_select 0, %s7, %s5
  $region1: #{gnn_forward.1} parent=0
    #allocation2 [shape = 'u8[1024]{0}', space=smem, size = 0x400, scoped, tag = 'input window, operand 0, single buffered']
    #allocation3 [shape = 's32[1]{0}', space=sflag, size = 0x4, scoped, tag = 'scoped memory for gnn_forward.1']
    #allocation4 [shape = 's32[1]{0}', space=sflag, size = 0x4, scoped, tag = 'scoped memory for gnn_forward.1']
    #allocation5 [shape = 'u8[36864]{0}', space=vmem, size = 0x9000, scoped, tag = 'input window, operand 2, single buffered']
    %9 = vsyncpa [#allocation4], 0
    %10 = vsyncpa [#allocation3], 0
    // Predicated region
    $region2: #{gnn_forward.1} parent=1 // pred_check
      _
    $region3: #{gnn_forward.1} parent=1 // pred_check_branch
      %12 = sbr.rel (0) target = $region5
    $region4: #{gnn_forward.1} parent=1 // pred_region
      %s14 = ssub.s32 32, 32
      %15 = vsyncadd [#allocation4], %s14
      %s17 = sshll.u32 %s0, 4
      %s18 = int_to_ptr.vmem [resolvable:$true] %s17
      %20 = dma.vmem_to_smem %s18, 32, [#allocation2], [#allocation4]
    $region5: #{gnn_forward.1} parent=1 // pred_fallthru
      _
    // Predicated region
    $region6: #{gnn_forward.1} parent=1 // pred_check
      _
    $region7: #{gnn_forward.1} parent=1 // pred_check_branch
      %22 = sbr.rel (0) target = $region9
    $region8: #{gnn_forward.1} parent=1 // pred_region
      _
    $region9: #{gnn_forward.1} parent=1 // pred_fallthru
      _
    // Predicated region
    $region10: #{gnn_forward.1} parent=1 // pred_check
      _
    $region11: #{gnn_forward.1} parent=1 // pred_check_branch
      %24 = sbr.rel (0) target = $region13
    $region12: #{gnn_forward.1} parent=1 // pred_region
      %s26 = ssub.s32 1152, 1152
      %27 = vsyncadd [#allocation3], %s26
      %s28 = sshll.u32 [#allocation5], 4
      %s29 = int_to_ptr.vmem [resolvable:$true] %s28
      %34 = dma.hbm_to_vmem [thread:$0]  %s2, 1152, %s29, [#allocation3], 128, 128, 8
    $region13: #{gnn_forward.1} parent=1 // pred_fallthru
      _
    // Predicated region
    $region14: #{gnn_forward.1} parent=1 // pred_check
      _
    $region15: #{gnn_forward.1} parent=1 // pred_check_branch
      %36 = sbr.rel (0) target = $region17
    $region16: #{gnn_forward.1} parent=1 // pred_region
      _
    $region17: #{gnn_forward.1} parent=1 // pred_fallthru
      _
    // Predicated region
    $region18: #{gnn_forward.1} parent=1 // pred_check
      _
    $region19: #{gnn_forward.1} parent=1 // pred_check_branch
      %38 = sbr.rel (0) target = $region21
    $region20: #{gnn_forward.1} parent=1 // pred_region
      %39 = dma.done [#allocation4], 32
    $region21: #{gnn_forward.1} parent=1 // pred_fallthru
      _
    // Predicated region
    $region22: #{gnn_forward.1} parent=1 // pred_check
      _
    $region23: #{gnn_forward.1} parent=1 // pred_check_branch
      %41 = sbr.rel (0) target = $region25
    $region24: #{gnn_forward.1} parent=1 // pred_region
      %42 = dma.done [#allocation3], 1152
    $region25: #{gnn_forward.1} parent=1 // pred_fallthru
      _
    %43 = sfence
    %v44 = vlaneseq
    %v45 = vshrl.u32 %v44, 7
    %v46 = vadd.s32 %v45, 8
    %v47 = vlaneseq
    %v48 = vand.u32 %v47, 127
    %s49 = sld [smem:[#allocation2]]
    %s50 = sld [smem:[#allocation2 + $0x80]]
    %v51 = vstv %s50
    %vm52 = vcmp.eq.s32.totalorder %v45, %v51
    %vm53 = vcmp.eq.s32.totalorder %v46, %v51
    %v54 = vstv %s49
    %vm55 = vcmp.eq.s32.totalorder %v48, %v54
    %vm56 = vmand %vm52, %vm55
    %vm57 = vmand %vm53, %vm55
    %v58 = vsel %vm56, 1, 0
    %v59 = vsel %vm57, 1, 0
    %v60 = vcvt.s32.f32 %v58
    %v61 = vcvt.s32.f32 %v59
    %v62 = vadd.f32 %v60, 0.0
    %v63 = vadd.f32 %v61, 0.0
    %s64 = sld [smem:[#allocation2 + $0x1]]
    %s65 = sld [smem:[#allocation2 + $0x81]]
    %v66 = vstv %s65
    %vm67 = vcmp.eq.s32.totalorder %v45, %v66
    %vm68 = vcmp.eq.s32.totalorder %v46, %v66
    %v69 = vstv %s64
    %vm70 = vcmp.eq.s32.totalorder %v48, %v69
    %vm71 = vmand %vm67, %vm70
    %vm72 = vmand %vm68, %vm70
    %v73 = vsel %vm71, 1, 0
    %v74 = vsel %vm72, 1, 0
    %v75 = vcvt.s32.f32 %v73
    %v76 = vcvt.s32.f32 %v74
    %v77 = vadd.f32 %v62, %v75
    %v78 = vadd.f32 %v63, %v76
    %s79 = sld [smem:[#allocation2 + $0x2]]
    %s80 = sld [smem:[#allocation2 + $0x82]]
    %v81 = vstv %s80
    %vm82 = vcmp.eq.s32.totalorder %v45, %v81
    %vm83 = vcmp.eq.s32.totalorder %v46, %v81
    %v84 = vstv %s79
    %vm85 = vcmp.eq.s32.totalorder %v48, %v84
    %vm86 = vmand %vm82, %vm85
    %vm87 = vmand %vm83, %vm85
    %v88 = vsel %vm86, 1, 0
    %v89 = vsel %vm87, 1, 0
    %v90 = vcvt.s32.f32 %v88
    %v91 = vcvt.s32.f32 %v89
    %v92 = vadd.f32 %v77, %v90
    %v93 = vadd.f32 %v78, %v91
    %s94 = sld [smem:[#allocation2 + $0x3]]
    %s95 = sld [smem:[#allocation2 + $0x83]]
    %v96 = vstv %s95
    %vm97 = vcmp.eq.s32.totalorder %v45, %v96
    %vm98 = vcmp.eq.s32.totalorder %v46, %v96
    %v99 = vstv %s94
    %vm100 = vcmp.eq.s32.totalorder %v48, %v99
    %vm101 = vmand %vm97, %vm100
    %vm102 = vmand %vm98, %vm100
    %v103 = vsel %vm101, 1, 0
    %v104 = vsel %vm102, 1, 0
    %v105 = vcvt.s32.f32 %v103
    %v106 = vcvt.s32.f32 %v104
    %v107 = vadd.f32 %v92, %v105
    %v108 = vadd.f32 %v93, %v106
    %s109 = sld [smem:[#allocation2 + $0x4]]
    %s110 = sld [smem:[#allocation2 + $0x84]]
    %v111 = vstv %s110
    %vm112 = vcmp.eq.s32.totalorder %v45, %v111
    %vm113 = vcmp.eq.s32.totalorder %v46, %v111
    %v114 = vstv %s109
    %vm115 = vcmp.eq.s32.totalorder %v48, %v114
    %vm116 = vmand %vm112, %vm115
    %vm117 = vmand %vm113, %vm115
    %v118 = vsel %vm116, 1, 0
    %v119 = vsel %vm117, 1, 0
    %v120 = vcvt.s32.f32 %v118
    %v121 = vcvt.s32.f32 %v119
    %v122 = vadd.f32 %v107, %v120
    %v123 = vadd.f32 %v108, %v121
    %s124 = sld [smem:[#allocation2 + $0x5]]
    %s125 = sld [smem:[#allocation2 + $0x85]]
    %v126 = vstv %s125
    %vm127 = vcmp.eq.s32.totalorder %v45, %v126
    %vm128 = vcmp.eq.s32.totalorder %v46, %v126
    %v129 = vstv %s124
    %vm130 = vcmp.eq.s32.totalorder %v48, %v129
    %vm131 = vmand %vm127, %vm130
    %vm132 = vmand %vm128, %vm130
    %v133 = vsel %vm131, 1, 0
    %v134 = vsel %vm132, 1, 0
    %v135 = vcvt.s32.f32 %v133
    %v136 = vcvt.s32.f32 %v134
    %v137 = vadd.f32 %v122, %v135
    %v138 = vadd.f32 %v123, %v136
    %s139 = sld [smem:[#allocation2 + $0x6]]
    %s140 = sld [smem:[#allocation2 + $0x86]]
    %v141 = vstv %s140
    %vm142 = vcmp.eq.s32.totalorder %v45, %v141
    %vm143 = vcmp.eq.s32.totalorder %v46, %v141
    %v144 = vstv %s139
    %vm145 = vcmp.eq.s32.totalorder %v48, %v144
    %vm146 = vmand %vm142, %vm145
    %vm147 = vmand %vm143, %vm145
    %v148 = vsel %vm146, 1, 0
    %v149 = vsel %vm147, 1, 0
    %v150 = vcvt.s32.f32 %v148
    %v151 = vcvt.s32.f32 %v149
    %v152 = vadd.f32 %v137, %v150
    %v153 = vadd.f32 %v138, %v151
    %s154 = sld [smem:[#allocation2 + $0x7]]
    %s155 = sld [smem:[#allocation2 + $0x87]]
    %v156 = vstv %s155
    %vm157 = vcmp.eq.s32.totalorder %v45, %v156
    %vm158 = vcmp.eq.s32.totalorder %v46, %v156
    %v159 = vstv %s154
    %vm160 = vcmp.eq.s32.totalorder %v48, %v159
    %vm161 = vmand %vm157, %vm160
    %vm162 = vmand %vm158, %vm160
    %v163 = vsel %vm161, 1, 0
    %v164 = vsel %vm162, 1, 0
    %v165 = vcvt.s32.f32 %v163
    %v166 = vcvt.s32.f32 %v164
    %v167 = vadd.f32 %v152, %v165
    %v168 = vadd.f32 %v153, %v166
    %s169 = sld [smem:[#allocation2 + $0x8]]
    %s170 = sld [smem:[#allocation2 + $0x88]]
    %v171 = vstv %s170
    %vm172 = vcmp.eq.s32.totalorder %v45, %v171
    %vm173 = vcmp.eq.s32.totalorder %v46, %v171
    %v174 = vstv %s169
    %vm175 = vcmp.eq.s32.totalorder %v48, %v174
    %vm176 = vmand %vm172, %vm175
    %vm177 = vmand %vm173, %vm175
    %v178 = vsel %vm176, 1, 0
    %v179 = vsel %vm177, 1, 0
    %v180 = vcvt.s32.f32 %v178
    %v181 = vcvt.s32.f32 %v179
    %v182 = vadd.f32 %v167, %v180
    %v183 = vadd.f32 %v168, %v181
    %s184 = sld [smem:[#allocation2 + $0x9]]
    %s185 = sld [smem:[#allocation2 + $0x89]]
    %v186 = vstv %s185
    %vm187 = vcmp.eq.s32.totalorder %v45, %v186
    %vm188 = vcmp.eq.s32.totalorder %v46, %v186
    %v189 = vstv %s184
    %vm190 = vcmp.eq.s32.totalorder %v48, %v189
    %vm191 = vmand %vm187, %vm190
    %vm192 = vmand %vm188, %vm190
    %v193 = vsel %vm191, 1, 0
    %v194 = vsel %vm192, 1, 0
    %v195 = vcvt.s32.f32 %v193
    %v196 = vcvt.s32.f32 %v194
    %v197 = vadd.f32 %v182, %v195
    %v198 = vadd.f32 %v183, %v196
    %s199 = sld [smem:[#allocation2 + $0xa]]
    %s200 = sld [smem:[#allocation2 + $0x8a]]
    %v201 = vstv %s200
    %vm202 = vcmp.eq.s32.totalorder %v45, %v201
    %vm203 = vcmp.eq.s32.totalorder %v46, %v201
    %v204 = vstv %s199
    %vm205 = vcmp.eq.s32.totalorder %v48, %v204
    %vm206 = vmand %vm202, %vm205
    %vm207 = vmand %vm203, %vm205
    %v208 = vsel %vm206, 1, 0
    %v209 = vsel %vm207, 1, 0
    %v210 = vcvt.s32.f32 %v208
    %v211 = vcvt.s32.f32 %v209
    %v212 = vadd.f32 %v197, %v210
    %v213 = vadd.f32 %v198, %v211
    %s214 = sld [smem:[#allocation2 + $0xb]]
    %s215 = sld [smem:[#allocation2 + $0x8b]]
    %v216 = vstv %s215
    %vm217 = vcmp.eq.s32.totalorder %v45, %v216
    %vm218 = vcmp.eq.s32.totalorder %v46, %v216
    %v219 = vstv %s214
    %vm220 = vcmp.eq.s32.totalorder %v48, %v219
    %vm221 = vmand %vm217, %vm220
    %vm222 = vmand %vm218, %vm220
    %v223 = vsel %vm221, 1, 0
    %v224 = vsel %vm222, 1, 0
    %v225 = vcvt.s32.f32 %v223
    %v226 = vcvt.s32.f32 %v224
    %v227 = vadd.f32 %v212, %v225
    %v228 = vadd.f32 %v213, %v226
    %s229 = sld [smem:[#allocation2 + $0xc]]
    %s230 = sld [smem:[#allocation2 + $0x8c]]
    %v231 = vstv %s230
    %vm232 = vcmp.eq.s32.totalorder %v45, %v231
    %vm233 = vcmp.eq.s32.totalorder %v46, %v231
    %v234 = vstv %s229
    %vm235 = vcmp.eq.s32.totalorder %v48, %v234
    %vm236 = vmand %vm232, %vm235
    %vm237 = vmand %vm233, %vm235
    %v238 = vsel %vm236, 1, 0
    %v239 = vsel %vm237, 1, 0
    %v240 = vcvt.s32.f32 %v238
    %v241 = vcvt.s32.f32 %v239
    %v242 = vadd.f32 %v227, %v240
    %v243 = vadd.f32 %v228, %v241
    %s244 = sld [smem:[#allocation2 + $0xd]]
    %s245 = sld [smem:[#allocation2 + $0x8d]]
    %v246 = vstv %s245
    %vm247 = vcmp.eq.s32.totalorder %v45, %v246
    %vm248 = vcmp.eq.s32.totalorder %v46, %v246
    %v249 = vstv %s244
    %vm250 = vcmp.eq.s32.totalorder %v48, %v249
    %vm251 = vmand %vm247, %vm250
    %vm252 = vmand %vm248, %vm250
    %v253 = vsel %vm251, 1, 0
    %v254 = vsel %vm252, 1, 0
    %v255 = vcvt.s32.f32 %v253
    %v256 = vcvt.s32.f32 %v254
    %v257 = vadd.f32 %v242, %v255
    %v258 = vadd.f32 %v243, %v256
    %s259 = sld [smem:[#allocation2 + $0xe]]
    %s260 = sld [smem:[#allocation2 + $0x8e]]
    %v261 = vstv %s260
    %vm262 = vcmp.eq.s32.totalorder %v45, %v261
    %vm263 = vcmp.eq.s32.totalorder %v46, %v261
    %v264 = vstv %s259
    %vm265 = vcmp.eq.s32.totalorder %v48, %v264
    %vm266 = vmand %vm262, %vm265
    %vm267 = vmand %vm263, %vm265
    %v268 = vsel %vm266, 1, 0
    %v269 = vsel %vm267, 1, 0
    %v270 = vcvt.s32.f32 %v268
    %v271 = vcvt.s32.f32 %v269
    %v272 = vadd.f32 %v257, %v270
    %v273 = vadd.f32 %v258, %v271
    %s274 = sld [smem:[#allocation2 + $0xf]]
    %s275 = sld [smem:[#allocation2 + $0x8f]]
    %v276 = vstv %s275
    %vm277 = vcmp.eq.s32.totalorder %v45, %v276
    %vm278 = vcmp.eq.s32.totalorder %v46, %v276
    %v279 = vstv %s274
    %vm280 = vcmp.eq.s32.totalorder %v48, %v279
    %vm281 = vmand %vm277, %vm280
    %vm282 = vmand %vm278, %vm280
    %v283 = vsel %vm281, 1, 0
    %v284 = vsel %vm282, 1, 0
    %v285 = vcvt.s32.f32 %v283
    %v286 = vcvt.s32.f32 %v284
    %v287 = vadd.f32 %v272, %v285
    %v288 = vadd.f32 %v273, %v286
    %s289 = sld [smem:[#allocation2 + $0x10]]
    %s290 = sld [smem:[#allocation2 + $0x90]]
    %v291 = vstv %s290
    %vm292 = vcmp.eq.s32.totalorder %v45, %v291
    %vm293 = vcmp.eq.s32.totalorder %v46, %v291
    %v294 = vstv %s289
    %vm295 = vcmp.eq.s32.totalorder %v48, %v294
    %vm296 = vmand %vm292, %vm295
    %vm297 = vmand %vm293, %vm295
    %v298 = vsel %vm296, 1, 0
    %v299 = vsel %vm297, 1, 0
    %v300 = vcvt.s32.f32 %v298
    %v301 = vcvt.s32.f32 %v299
    %v302 = vadd.f32 %v287, %v300
    %v303 = vadd.f32 %v288, %v301
    %s304 = sld [smem:[#allocation2 + $0x11]]
    %s305 = sld [smem:[#allocation2 + $0x91]]
    %v306 = vstv %s305
    %vm307 = vcmp.eq.s32.totalorder %v45, %v306
    %vm308 = vcmp.eq.s32.totalorder %v46, %v306
    %v309 = vstv %s304
    %vm310 = vcmp.eq.s32.totalorder %v48, %v309
    %vm311 = vmand %vm307, %vm310
    %vm312 = vmand %vm308, %vm310
    %v313 = vsel %vm311, 1, 0
    %v314 = vsel %vm312, 1, 0
    %v315 = vcvt.s32.f32 %v313
    %v316 = vcvt.s32.f32 %v314
    %v317 = vadd.f32 %v302, %v315
    %v318 = vadd.f32 %v303, %v316
    %s319 = sld [smem:[#allocation2 + $0x12]]
    %s320 = sld [smem:[#allocation2 + $0x92]]
    %v321 = vstv %s320
    %vm322 = vcmp.eq.s32.totalorder %v45, %v321
    %vm323 = vcmp.eq.s32.totalorder %v46, %v321
    %v324 = vstv %s319
    %vm325 = vcmp.eq.s32.totalorder %v48, %v324
    %vm326 = vmand %vm322, %vm325
    %vm327 = vmand %vm323, %vm325
    %v328 = vsel %vm326, 1, 0
    %v329 = vsel %vm327, 1, 0
    %v330 = vcvt.s32.f32 %v328
    %v331 = vcvt.s32.f32 %v329
    %v332 = vadd.f32 %v317, %v330
    %v333 = vadd.f32 %v318, %v331
    %s334 = sld [smem:[#allocation2 + $0x13]]
    %s335 = sld [smem:[#allocation2 + $0x93]]
    %v336 = vstv %s335
    %vm337 = vcmp.eq.s32.totalorder %v45, %v336
    %vm338 = vcmp.eq.s32.totalorder %v46, %v336
    %v339 = vstv %s334
    %vm340 = vcmp.eq.s32.totalorder %v48, %v339
    %vm341 = vmand %vm337, %vm340
    %vm342 = vmand %vm338, %vm340
    %v343 = vsel %vm341, 1, 0
    %v344 = vsel %vm342, 1, 0
    %v345 = vcvt.s32.f32 %v343
    %v346 = vcvt.s32.f32 %v344
    %v347 = vadd.f32 %v332, %v345
    %v348 = vadd.f32 %v333, %v346
    %s349 = sld [smem:[#allocation2 + $0x14]]
    %s350 = sld [smem:[#allocation2 + $0x94]]
    %v351 = vstv %s350
    %vm352 = vcmp.eq.s32.totalorder %v45, %v351
    %vm353 = vcmp.eq.s32.totalorder %v46, %v351
    %v354 = vstv %s349
    %vm355 = vcmp.eq.s32.totalorder %v48, %v354
    %vm356 = vmand %vm352, %vm355
    %vm357 = vmand %vm353, %vm355
    %v358 = vsel %vm356, 1, 0
    %v359 = vsel %vm357, 1, 0
    %v360 = vcvt.s32.f32 %v358
    %v361 = vcvt.s32.f32 %v359
    %v362 = vadd.f32 %v347, %v360
    %v363 = vadd.f32 %v348, %v361
    %s364 = sld [smem:[#allocation2 + $0x15]]
    %s365 = sld [smem:[#allocation2 + $0x95]]
    %v366 = vstv %s365
    %vm367 = vcmp.eq.s32.totalorder %v45, %v366
    %vm368 = vcmp.eq.s32.totalorder %v46, %v366
    %v369 = vstv %s364
    %vm370 = vcmp.eq.s32.totalorder %v48, %v369
    %vm371 = vmand %vm367, %vm370
    %vm372 = vmand %vm368, %vm370
    %v373 = vsel %vm371, 1, 0
    %v374 = vsel %vm372, 1, 0
    %v375 = vcvt.s32.f32 %v373
    %v376 = vcvt.s32.f32 %v374
    %v377 = vadd.f32 %v362, %v375
    %v378 = vadd.f32 %v363, %v376
    %s379 = sld [smem:[#allocation2 + $0x16]]
    %s380 = sld [smem:[#allocation2 + $0x96]]
    %v381 = vstv %s380
    %vm382 = vcmp.eq.s32.totalorder %v45, %v381
    %vm383 = vcmp.eq.s32.totalorder %v46, %v381
    %v384 = vstv %s379
    %vm385 = vcmp.eq.s32.totalorder %v48, %v384
    %vm386 = vmand %vm382, %vm385
    %vm387 = vmand %vm383, %vm385
    %v388 = vsel %vm386, 1, 0
    %v389 = vsel %vm387, 1, 0
    %v390 = vcvt.s32.f32 %v388
    %v391 = vcvt.s32.f32 %v389
    %v392 = vadd.f32 %v377, %v390
    %v393 = vadd.f32 %v378, %v391
    %s394 = sld [smem:[#allocation2 + $0x17]]
    %s395 = sld [smem:[#allocation2 + $0x97]]
    %v396 = vstv %s395
    %vm397 = vcmp.eq.s32.totalorder %v45, %v396
    %vm398 = vcmp.eq.s32.totalorder %v46, %v396
    %v399 = vstv %s394
    %vm400 = vcmp.eq.s32.totalorder %v48, %v399
    %vm401 = vmand %vm397, %vm400
    %vm402 = vmand %vm398, %vm400
    %v403 = vsel %vm401, 1, 0
    %v404 = vsel %vm402, 1, 0
    %v405 = vcvt.s32.f32 %v403
    %v406 = vcvt.s32.f32 %v404
    %v407 = vadd.f32 %v392, %v405
    %v408 = vadd.f32 %v393, %v406
    %s409 = sld [smem:[#allocation2 + $0x18]]
    %s410 = sld [smem:[#allocation2 + $0x98]]
    %v411 = vstv %s410
    %vm412 = vcmp.eq.s32.totalorder %v45, %v411
    %vm413 = vcmp.eq.s32.totalorder %v46, %v411
    %v414 = vstv %s409
    %vm415 = vcmp.eq.s32.totalorder %v48, %v414
    %vm416 = vmand %vm412, %vm415
    %vm417 = vmand %vm413, %vm415
    %v418 = vsel %vm416, 1, 0
    %v419 = vsel %vm417, 1, 0
    %v420 = vcvt.s32.f32 %v418
    %v421 = vcvt.s32.f32 %v419
    %v422 = vadd.f32 %v407, %v420
    %v423 = vadd.f32 %v408, %v421
    %s424 = sld [smem:[#allocation2 + $0x19]]
    %s425 = sld [smem:[#allocation2 + $0x99]]
    %v426 = vstv %s425
    %vm427 = vcmp.eq.s32.totalorder %v45, %v426
    %vm428 = vcmp.eq.s32.totalorder %v46, %v426
    %v429 = vstv %s424
    %vm430 = vcmp.eq.s32.totalorder %v48, %v429
    %vm431 = vmand %vm427, %vm430
    %vm432 = vmand %vm428, %vm430
    %v433 = vsel %vm431, 1, 0
    %v434 = vsel %vm432, 1, 0
    %v435 = vcvt.s32.f32 %v433
    %v436 = vcvt.s32.f32 %v434
    %v437 = vadd.f32 %v422, %v435
    %v438 = vadd.f32 %v423, %v436
    %s439 = sld [smem:[#allocation2 + $0x1a]]
    %s440 = sld [smem:[#allocation2 + $0x9a]]
    %v441 = vstv %s440
    %vm442 = vcmp.eq.s32.totalorder %v45, %v441
    %vm443 = vcmp.eq.s32.totalorder %v46, %v441
    %v444 = vstv %s439
    %vm445 = vcmp.eq.s32.totalorder %v48, %v444
    %vm446 = vmand %vm442, %vm445
    %vm447 = vmand %vm443, %vm445
    %v448 = vsel %vm446, 1, 0
    %v449 = vsel %vm447, 1, 0
    %v450 = vcvt.s32.f32 %v448
    %v451 = vcvt.s32.f32 %v449
    %v452 = vadd.f32 %v437, %v450
    %v453 = vadd.f32 %v438, %v451
    %s454 = sld [smem:[#allocation2 + $0x1b]]
    %s455 = sld [smem:[#allocation2 + $0x9b]]
    %v456 = vstv %s455
    %vm457 = vcmp.eq.s32.totalorder %v45, %v456
    %vm458 = vcmp.eq.s32.totalorder %v46, %v456
    %v459 = vstv %s454
    %vm460 = vcmp.eq.s32.totalorder %v48, %v459
    %vm461 = vmand %vm457, %vm460
    %vm462 = vmand %vm458, %vm460
    %v463 = vsel %vm461, 1, 0
    %v464 = vsel %vm462, 1, 0
    %v465 = vcvt.s32.f32 %v463
    %v466 = vcvt.s32.f32 %v464
    %v467 = vadd.f32 %v452, %v465
    %v468 = vadd.f32 %v453, %v466
    %s469 = sld [smem:[#allocation2 + $0x1c]]
    %s470 = sld [smem:[#allocation2 + $0x9c]]
    %v471 = vstv %s470
    %vm472 = vcmp.eq.s32.totalorder %v45, %v471
    %vm473 = vcmp.eq.s32.totalorder %v46, %v471
    %v474 = vstv %s469
    %vm475 = vcmp.eq.s32.totalorder %v48, %v474
    %vm476 = vmand %vm472, %vm475
    %vm477 = vmand %vm473, %vm475
    %v478 = vsel %vm476, 1, 0
    %v479 = vsel %vm477, 1, 0
    %v480 = vcvt.s32.f32 %v478
    %v481 = vcvt.s32.f32 %v479
    %v482 = vadd.f32 %v467, %v480
    %v483 = vadd.f32 %v468, %v481
    %s484 = sld [smem:[#allocation2 + $0x1d]]
    %s485 = sld [smem:[#allocation2 + $0x9d]]
    %v486 = vstv %s485
    %vm487 = vcmp.eq.s32.totalorder %v45, %v486
    %vm488 = vcmp.eq.s32.totalorder %v46, %v486
    %v489 = vstv %s484
    %vm490 = vcmp.eq.s32.totalorder %v48, %v489
    %vm491 = vmand %vm487, %vm490
    %vm492 = vmand %vm488, %vm490
    %v493 = vsel %vm491, 1, 0
    %v494 = vsel %vm492, 1, 0
    %v495 = vcvt.s32.f32 %v493
    %v496 = vcvt.s32.f32 %v494
    %v497 = vadd.f32 %v482, %v495
    %v498 = vadd.f32 %v483, %v496
    %s499 = sld [smem:[#allocation2 + $0x1e]]
    %s500 = sld [smem:[#allocation2 + $0x9e]]
    %v501 = vstv %s500
    %vm502 = vcmp.eq.s32.totalorder %v45, %v501
    %vm503 = vcmp.eq.s32.totalorder %v46, %v501
    %v504 = vstv %s499
    %vm505 = vcmp.eq.s32.totalorder %v48, %v504
    %vm506 = vmand %vm502, %vm505
    %vm507 = vmand %vm503, %vm505
    %v508 = vsel %vm506, 1, 0
    %v509 = vsel %vm507, 1, 0
    %v510 = vcvt.s32.f32 %v508
    %v511 = vcvt.s32.f32 %v509
    %v512 = vadd.f32 %v497, %v510
    %v513 = vadd.f32 %v498, %v511
    %s514 = sld [smem:[#allocation2 + $0x1f]]
    %s515 = sld [smem:[#allocation2 + $0x9f]]
    %v516 = vstv %s515
    %vm517 = vcmp.eq.s32.totalorder %v45, %v516
    %vm518 = vcmp.eq.s32.totalorder %v46, %v516
    %v519 = vstv %s514
    %vm520 = vcmp.eq.s32.totalorder %v48, %v519
    %vm521 = vmand %vm517, %vm520
    %vm522 = vmand %vm518, %vm520
    %v523 = vsel %vm521, 1, 0
    %v524 = vsel %vm522, 1, 0
    %v525 = vcvt.s32.f32 %v523
    %v526 = vcvt.s32.f32 %v524
    %v527 = vadd.f32 %v512, %v525
    %v528 = vadd.f32 %v513, %v526
    %s529 = sld [smem:[#allocation2 + $0x20]]
    %s530 = sld [smem:[#allocation2 + $0xa0]]
    %v531 = vstv %s530
    %vm532 = vcmp.eq.s32.totalorder %v45, %v531
    %vm533 = vcmp.eq.s32.totalorder %v46, %v531
    %v534 = vstv %s529
    %vm535 = vcmp.eq.s32.totalorder %v48, %v534
    %vm536 = vmand %vm532, %vm535
    %vm537 = vmand %vm533, %vm535
    %v538 = vsel %vm536, 1, 0
    %v539 = vsel %vm537, 1, 0
    %v540 = vcvt.s32.f32 %v538
    %v541 = vcvt.s32.f32 %v539
    %v542 = vadd.f32 %v527, %v540
    %v543 = vadd.f32 %v528, %v541
    %s544 = sld [smem:[#allocation2 + $0x21]]
    %s545 = sld [smem:[#allocation2 + $0xa1]]
    %v546 = vstv %s545
    %vm547 = vcmp.eq.s32.totalorder %v45, %v546
    %vm548 = vcmp.eq.s32.totalorder %v46, %v546
    %v549 = vstv %s544
    %vm550 = vcmp.eq.s32.totalorder %v48, %v549
    %vm551 = vmand %vm547, %vm550
    %vm552 = vmand %vm548, %vm550
    %v553 = vsel %vm551, 1, 0
    %v554 = vsel %vm552, 1, 0
    %v555 = vcvt.s32.f32 %v553
    %v556 = vcvt.s32.f32 %v554
    %v557 = vadd.f32 %v542, %v555
    %v558 = vadd.f32 %v543, %v556
    %s559 = sld [smem:[#allocation2 + $0x22]]
    %s560 = sld [smem:[#allocation2 + $0xa2]]
    %v561 = vstv %s560
    %vm562 = vcmp.eq.s32.totalorder %v45, %v561
    %vm563 = vcmp.eq.s32.totalorder %v46, %v561
    %v564 = vstv %s559
    %vm565 = vcmp.eq.s32.totalorder %v48, %v564
    %vm566 = vmand %vm562, %vm565
    %vm567 = vmand %vm563, %vm565
    %v568 = vsel %vm566, 1, 0
    %v569 = vsel %vm567, 1, 0
    %v570 = vcvt.s32.f32 %v568
    %v571 = vcvt.s32.f32 %v569
    %v572 = vadd.f32 %v557, %v570
    %v573 = vadd.f32 %v558, %v571
    %s574 = sld [smem:[#allocation2 + $0x23]]
    %s575 = sld [smem:[#allocation2 + $0xa3]]
    %v576 = vstv %s575
    %vm577 = vcmp.eq.s32.totalorder %v45, %v576
    %vm578 = vcmp.eq.s32.totalorder %v46, %v576
    %v579 = vstv %s574
    %vm580 = vcmp.eq.s32.totalorder %v48, %v579
    %vm581 = vmand %vm577, %vm580
    %vm582 = vmand %vm578, %vm580
    %v583 = vsel %vm581, 1, 0
    %v584 = vsel %vm582, 1, 0
    %v585 = vcvt.s32.f32 %v583
    %v586 = vcvt.s32.f32 %v584
    %v587 = vadd.f32 %v572, %v585
    %v588 = vadd.f32 %v573, %v586
    %s589 = sld [smem:[#allocation2 + $0x24]]
    %s590 = sld [smem:[#allocation2 + $0xa4]]
    %v591 = vstv %s590
    %vm592 = vcmp.eq.s32.totalorder %v45, %v591
    %vm593 = vcmp.eq.s32.totalorder %v46, %v591
    %v594 = vstv %s589
    %vm595 = vcmp.eq.s32.totalorder %v48, %v594
    %vm596 = vmand %vm592, %vm595
    %vm597 = vmand %vm593, %vm595
    %v598 = vsel %vm596, 1, 0
    %v599 = vsel %vm597, 1, 0
    %v600 = vcvt.s32.f32 %v598
    %v601 = vcvt.s32.f32 %v599
    %v602 = vadd.f32 %v587, %v600
    %v603 = vadd.f32 %v588, %v601
    %s604 = sld [smem:[#allocation2 + $0x25]]
    %s605 = sld [smem:[#allocation2 + $0xa5]]
    %v606 = vstv %s605
    %vm607 = vcmp.eq.s32.totalorder %v45, %v606
    %vm608 = vcmp.eq.s32.totalorder %v46, %v606
    %v609 = vstv %s604
    %vm610 = vcmp.eq.s32.totalorder %v48, %v609
    %vm611 = vmand %vm607, %vm610
    %vm612 = vmand %vm608, %vm610
    %v613 = vsel %vm611, 1, 0
    %v614 = vsel %vm612, 1, 0
    %v615 = vcvt.s32.f32 %v613
    %v616 = vcvt.s32.f32 %v614
    %v617 = vadd.f32 %v602, %v615
    %v618 = vadd.f32 %v603, %v616
    %s619 = sld [smem:[#allocation2 + $0x26]]
    %s620 = sld [smem:[#allocation2 + $0xa6]]
    %v621 = vstv %s620
    %vm622 = vcmp.eq.s32.totalorder %v45, %v621
    %vm623 = vcmp.eq.s32.totalorder %v46, %v621
    %v624 = vstv %s619
    %vm625 = vcmp.eq.s32.totalorder %v48, %v624
    %vm626 = vmand %vm622, %vm625
    %vm627 = vmand %vm623, %vm625
    %v628 = vsel %vm626, 1, 0
    %v629 = vsel %vm627, 1, 0
    %v630 = vcvt.s32.f32 %v628
    %v631 = vcvt.s32.f32 %v629
    %v632 = vadd.f32 %v617, %v630
    %v633 = vadd.f32 %v618, %v631
    %s634 = sld [smem:[#allocation2 + $0x27]]
    %s635 = sld [smem:[#allocation2 + $0xa7]]
    %v636 = vstv %s635
    %vm637 = vcmp.eq.s32.totalorder %v45, %v636
    %vm638 = vcmp.eq.s32.totalorder %v46, %v636
    %v639 = vstv %s634
    %vm640 = vcmp.eq.s32.totalorder %v48, %v639
    %vm641 = vmand %vm637, %vm640
    %vm642 = vmand %vm638, %vm640
    %v643 = vsel %vm641, 1, 0
    %v644 = vsel %vm642, 1, 0
    %v645 = vcvt.s32.f32 %v643
    %v646 = vcvt.s32.f32 %v644
    %v647 = vadd.f32 %v632, %v645
    %v648 = vadd.f32 %v633, %v646
    %vm649 = vcmp.eq.s32.totalorder %v45, %v48
    %vm650 = vcmp.eq.s32.totalorder %v46, %v48
    %vm651 = vcmp.lt.s32.totalorder %v45, 16
    %vm652 = vcmp.lt.s32.totalorder %v46, 16
    %vm653 = vmand %vm649, %vm651
    %vm654 = vmand %vm650, %vm652
    %vm655 = vcmp.eq.f32.partialorder %v647, 0.0
    %vm656 = vcmp.eq.f32.partialorder %v648, 0.0
    %vm657 = vmand %vm653, %vm655
    %vm658 = vmand %vm654, %vm656
    %v659 = vsel %vm657, 1.0, %v647
    %v660 = vsel %vm658, 1.0, %v648
    %vm661 = vcmask 130048
    %v662 = vsel %vm661, %v659, 0.0
    %663 = vadd.xlane.f32.xlu0 %v662
    %v664 = vpop.xlane.xlu0 %663
    %v665 = vsel %vm661, %v660, 0.0
    %666 = vadd.xlane.f32.xlu0 %v665
    %v667 = vpop.xlane.xlu0 %666
    %vm668 = vcmp.gt.f32.partialorder %v664, 0.0
    %vm669 = vcmp.gt.f32.partialorder %v667, 0.0
    %v670 = vmax.f32 %v664, 1.0
    %v671 = vmax.f32 %v667, 1.0
    %v672 = vrsqrt.pop %v670
    %v673 = vrsqrt.pop %v671
    %v674 = vsel %vm668, %v672, 0.0
    %v675 = vsel %vm669, %v673, 0.0
    %v676 = vsel %vm649, %v674, 0.0
    %v677 = vsel %vm650, %v675, 0.0
    %v678 = vsel %vm661, %v676, 0.0
    %v679 = vsel %vm661, %v677, 0.0
    %v680 = vadd.f32 %v678, %v679
    %v681 = vrot.slane %v680, 4
    %v682 = vadd.f32 %v680, %v681
    %v683 = vrot.slane %v682, 2
    %v684 = vadd.f32 %v682, %v683
    %v685 = vrot.slane %v684, 1
    %v686 = vadd.f32 %v684, %v685
    %v687 = vmul.f32 %v659, %v674
    %v688 = vmul.f32 %v660, %v675
    %v689 = vmul.f32 %v687, %v686
    %v690 = vmul.f32 %v688, %v686
    %v691 = vld [vmem:[%s1] sm:$0xff]
    %v692 = vld [vmem:[%s1 + $0x8] sm:$0xff]
    %v693 = vld [vmem:[#allocation5] sm:$0xf]
    %v694 = vld [vmem:[%s3] sm:$0x1]
    %v696 = vsel %vm661, %v689, 0
    %v699 = vsel %vm661, %v690, 0
    %701 = vmatprep.subr.mxu0 0.0
    %702 = vmatpush1.msra.mxu0 %v691
    %703 = vmatprep.subr.mxu0 0.0
    %704 = vmatpush1.msra.mxu0 %v692
    %705 = vmatprep.subr.mxu0 0.0
    %706 = vmatpush1.msra.mxu0 0.0
    %707 = vmatprep.subr.mxu0 0.0
    %708 = vmatpush1.msra.mxu0 0.0
    %709 = vmatprep.subr.mxu0 0.0
    %710 = vmatpush1.msra.mxu0 0.0
    %711 = vmatprep.subr.mxu0 0.0
    %712 = vmatpush1.msra.mxu0 0.0
    %713 = vmatprep.subr.mxu0 0.0
    %714 = vmatpush1.msra.mxu0 0.0
    %715 = vmatprep.subr.mxu0 0.0
    %716 = vmatpush1.msra.mxu0 0.0
    %717 = vmatprep.subr.mxu0 0.0
    %718 = vmatpush1.msra.mxu0 0.0
    %719 = vmatprep.subr.mxu0 0.0
    %720 = vmatpush1.msra.mxu0 0.0
    %721 = vmatprep.subr.mxu0 0.0
    %722 = vmatpush1.msra.mxu0 0.0
    %723 = vmatprep.subr.mxu0 0.0
    %724 = vmatpush1.msra.mxu0 0.0
    %725 = vmatprep.subr.mxu0 0.0
    %726 = vmatpush1.msra.mxu0 0.0
    %727 = vmatprep.subr.mxu0 0.0
    %728 = vmatpush1.msra.mxu0 0.0
    %729 = vmatprep.subr.mxu0 0.0
    %730 = vmatpush1.msra.mxu0 0.0
    %731 = vmatprep.subr.mxu0 0.0
    %732 = vmatpush1.msra.mxu0 0.0
    %733 = vmatprep.subr.mxu0 0.0
    %734 = vmatpush1.msra.mxu0 0.0
    %735 = vmatprep.subr.mxu0 0.0
    %736 = vmatpush1.msra.mxu0 0.0
    %737 = vmatprep.subr.mxu0 0.0
    %738 = vmatpush1.msra.mxu0 0.0
    %739 = vmatprep.subr.mxu0 0.0
    %740 = vmatpush1.msra.mxu0 0.0
    %741 = vmatprep.subr.mxu0 0.0
    %742 = vmatpush1.msra.mxu0 0.0
    %743 = vmatprep.subr.mxu0 0.0
    %744 = vmatpush1.msra.mxu0 0.0
    %745 = vmatprep.subr.mxu0 0.0
    %746 = vmatpush1.msra.mxu0 0.0
    %747 = vmatprep.subr.mxu0 0.0
    %748 = vmatpush1.msra.mxu0 0.0
    %749 = vmatprep.subr.mxu0 0.0
    %750 = vmatpush1.msra.mxu0 0.0
    %751 = vmatprep.subr.mxu0 0.0
    %752 = vmatpush1.msra.mxu0 0.0
    %753 = vmatprep.subr.mxu0 0.0
    %754 = vmatpush1.msra.mxu0 0.0
    %755 = vmatprep.subr.mxu0 0.0
    %756 = vmatpush1.msra.mxu0 0.0
    %757 = vmatprep.subr.mxu0 0.0
    %758 = vmatpush1.msra.mxu0 0.0
    %759 = vmatprep.subr.mxu0 0.0
    %760 = vmatpush1.msra.mxu0 0.0
    %761 = vmatprep.subr.mxu0 0.0
    %762 = vmatpush1.msra.mxu0 0.0
    %763 = vmatprep.subr.mxu0 0.0
    %764 = vmatpush1.msra.mxu0 0.0
    %765 = vmatprep.mubr.f32.mxu0 0.0
    %766 = vmatmul.mubr.f32.gmra.mrb[0].mxu0 %v696
    %v767 = vpop.f32.mrb[0].mxu0
    %v768 = vadd.f32 0.0, %v767
    %v769 = vpop.f32.mrb[0].mxu0
    %770 = vmatprep.mubr.f32.mxu0 0.0
    %771 = vmatmul.mubr.f32.gmra.mrb[0].mxu0 %v699
    %v772 = vpop.f32.mrb[0].mxu0
    %v773 = vadd.f32 0.0, %v772
    %v774 = vpop.f32.mrb[0].mxu0
    %775 = vdwg.mxu0
    %v776 = vlaneseq
    %v777 = vshrl.u32 %v776, 7
    %v778 = vsub.s32 0, %v777
    %v779 = vrot.slane %v694, %v778
    %vm780 = vcmask 31744
    %v782 = vsel %vm780, %v768, 0
    %v785 = vsel %vm780, %v773, 0
    %vm787 = vcmask 1043456
    %v789 = vsel %vm787, %v693, 0
    %791 = vmatprep.subr.mxu0 0.0
    %792 = vmatpush1.msra.mxu0 %v789
    %793 = vmatprep.subr.mxu0 0.0
    %794 = vmatpush1.msra.mxu0 0.0
    %795 = vmatprep.subr.mxu0 0.0
    %796 = vmatpush1.msra.mxu0 0.0
    %797 = vmatprep.subr.mxu0 0.0
    %798 = vmatpush1.msra.mxu0 0.0
    %799 = vmatprep.subr.mxu0 0.0
    %800 = vmatpush1.msra.mxu0 0.0
    %801 = vmatprep.subr.mxu0 0.0
    %802 = vmatpush1.msra.mxu0 0.0
    %803 = vmatprep.subr.mxu0 0.0
    %804 = vmatpush1.msra.mxu0 0.0
    %805 = vmatprep.subr.mxu0 0.0
    %806 = vmatpush1.msra.mxu0 0.0
    %807 = vmatprep.subr.mxu0 0.0
    %808 = vmatpush1.msra.mxu0 0.0
    %809 = vmatprep.subr.mxu0 0.0
    %810 = vmatpush1.msra.mxu0 0.0
    %811 = vmatprep.subr.mxu0 0.0
    %812 = vmatpush1.msra.mxu0 0.0
    %813 = vmatprep.subr.mxu0 0.0
    %814 = vmatpush1.msra.mxu0 0.0
    %815 = vmatprep.subr.mxu0 0.0
    %816 = vmatpush1.msra.mxu0 0.0
    %817 = vmatprep.subr.mxu0 0.0
    %818 = vmatpush1.msra.mxu0 0.0
    %819 = vmatprep.subr.mxu0 0.0
    %820 = vmatpush1.msra.mxu0 0.0
    %821 = vmatprep.subr.mxu0 0.0
    %822 = vmatpush1.msra.mxu0 0.0
    %823 = vmatprep.subr.mxu0 0.0
    %824 = vmatpush1.msra.mxu0 0.0
    %825 = vmatprep.subr.mxu0 0.0
    %826 = vmatpush1.msra.mxu0 0.0
    %827 = vmatprep.subr.mxu0 0.0
    %828 = vmatpush1.msra.mxu0 0.0
    %829 = vmatprep.subr.mxu0 0.0
    %830 = vmatpush1.msra.mxu0 0.0
    %831 = vmatprep.subr.mxu0 0.0
    %832 = vmatpush1.msra.mxu0 0.0
    %833 = vmatprep.subr.mxu0 0.0
    %834 = vmatpush1.msra.mxu0 0.0
    %835 = vmatprep.subr.mxu0 0.0
    %836 = vmatpush1.msra.mxu0 0.0
    %837 = vmatprep.subr.mxu0 0.0
    %838 = vmatpush1.msra.mxu0 0.0
    %839 = vmatprep.subr.mxu0 0.0
    %840 = vmatpush1.msra.mxu0 0.0
    %841 = vmatprep.subr.mxu0 0.0
    %842 = vmatpush1.msra.mxu0 0.0
    %843 = vmatprep.subr.mxu0 0.0
    %844 = vmatpush1.msra.mxu0 0.0
    %845 = vmatprep.subr.mxu0 0.0
    %846 = vmatpush1.msra.mxu0 0.0
    %847 = vmatprep.subr.mxu0 0.0
    %848 = vmatpush1.msra.mxu0 0.0
    %849 = vmatprep.subr.mxu0 0.0
    %850 = vmatpush1.msra.mxu0 0.0
    %851 = vmatprep.subr.mxu0 0.0
    %852 = vmatpush1.msra.mxu0 0.0
    %853 = vmatprep.subr.mxu0 0.0
    %854 = vmatpush1.msra.mxu0 0.0
    %855 = vmatprep.mubr.f32.mxu0 0.0
    %856 = vmatmul.mubr.f32.gmra.mrb[0].mxu0 %v782
    %v857 = vpop.f32.mrb[0].mxu0
    %v858 = vadd.f32 %v779, %v857
    %v859 = vpop.f32.mrb[0].mxu0
    %860 = vmatprep.mubr.f32.mxu0 0.0
    %861 = vmatmul.mubr.f32.gmra.mrb[0].mxu0 %v785
    %v862 = vpop.f32.mrb[0].mxu0
    %v863 = vadd.f32 %v779, %v862
    %v864 = vpop.f32.mrb[0].mxu0
    %865 = vdwg.mxu0
    %v866 = vmax.f32 %v858, 0.0
    %v867 = vmax.f32 %v863, 0.0
    %v868 = vld [vmem:[#allocation5 + $0x8] sm:$0xff]
    %v869 = vld [vmem:[#allocation5 + $0x10] sm:$0xff]
    %v870 = vld [vmem:[#allocation5 + $0x18] sm:$0xff]
    %v871 = vld [vmem:[#allocation5 + $0x20] sm:$0xff]
    %v872 = vld [vmem:[%s3 + $0x1] sm:$0x1]
    %vm873 = vcmask 261120
    %v875 = vsel %vm873, %v866, 0
    %v878 = vsel %vm873, %v867, 0
    %880 = vmatprep.subr.mxu0 0.0
    %881 = vmatpush1.msra.mxu0 %v868
    %882 = vmatprep.subr.mxu0 0.0
    %883 = vmatpush1.msra.mxu0 %v869
    %884 = vmatprep.subr.mxu0 0.0
    %885 = vmatpush1.msra.mxu0 %v870
    %886 = vmatprep.subr.mxu0 0.0
    %887 = vmatpush1.msra.mxu0 %v871
    %888 = vmatprep.subr.mxu0 0.0
    %889 = vmatpush1.msra.mxu0 0.0
    %890 = vmatprep.subr.mxu0 0.0
    %891 = vmatpush1.msra.mxu0 0.0
    %892 = vmatprep.subr.mxu0 0.0
    %893 = vmatpush1.msra.mxu0 0.0
    %894 = vmatprep.subr.mxu0 0.0
    %895 = vmatpush1.msra.mxu0 0.0
    %896 = vmatprep.subr.mxu0 0.0
    %897 = vmatpush1.msra.mxu0 0.0
    %898 = vmatprep.subr.mxu0 0.0
    %899 = vmatpush1.msra.mxu0 0.0
    %900 = vmatprep.subr.mxu0 0.0
    %901 = vmatpush1.msra.mxu0 0.0
    %902 = vmatprep.subr.mxu0 0.0
    %903 = vmatpush1.msra.mxu0 0.0
    %904 = vmatprep.subr.mxu0 0.0
    %905 = vmatpush1.msra.mxu0 0.0
    %906 = vmatprep.subr.mxu0 0.0
    %907 = vmatpush1.msra.mxu0 0.0
    %908 = vmatprep.subr.mxu0 0.0
    %909 = vmatpush1.msra.mxu0 0.0
    %910 = vmatprep.subr.mxu0 0.0
    %911 = vmatpush1.msra.mxu0 0.0
    %912 = vmatprep.subr.mxu0 0.0
    %913 = vmatpush1.msra.mxu0 0.0
    %914 = vmatprep.subr.mxu0 0.0
    %915 = vmatpush1.msra.mxu0 0.0
    %916 = vmatprep.subr.mxu0 0.0
    %917 = vmatpush1.msra.mxu0 0.0
    %918 = vmatprep.subr.mxu0 0.0
    %919 = vmatpush1.msra.mxu0 0.0
    %920 = vmatprep.subr.mxu0 0.0
    %921 = vmatpush1.msra.mxu0 0.0
    %922 = vmatprep.subr.mxu0 0.0
    %923 = vmatpush1.msra.mxu0 0.0
    %924 = vmatprep.subr.mxu0 0.0
    %925 = vmatpush1.msra.mxu0 0.0
    %926 = vmatprep.subr.mxu0 0.0
    %927 = vmatpush1.msra.mxu0 0.0
    %928 = vmatprep.subr.mxu0 0.0
    %929 = vmatpush1.msra.mxu0 0.0
    %930 = vmatprep.subr.mxu0 0.0
    %931 = vmatpush1.msra.mxu0 0.0
    %932 = vmatprep.subr.mxu0 0.0
    %933 = vmatpush1.msra.mxu0 0.0
    %934 = vmatprep.subr.mxu0 0.0
    %935 = vmatpush1.msra.mxu0 0.0
    %936 = vmatprep.subr.mxu0 0.0
    %937 = vmatpush1.msra.mxu0 0.0
    %938 = vmatprep.subr.mxu0 0.0
    %939 = vmatpush1.msra.mxu0 0.0
    %940 = vmatprep.subr.mxu0 0.0
    %941 = vmatpush1.msra.mxu0 0.0
    %942 = vmatprep.subr.mxu0 0.0
    %943 = vmatpush1.msra.mxu0 0.0
    %944 = vmatprep.mubr.f32.mxu0 0.0
    %945 = vmatmul.mubr.f32.gmra.mrb[0].mxu0 %v875
    %v946 = vpop.f32.mrb[0].mxu0
    %v947 = vadd.f32 0.0, %v946
    %v948 = vpop.f32.mrb[0].mxu0
    %949 = vmatprep.mubr.f32.mxu0 0.0
    %950 = vmatmul.mubr.f32.gmra.mrb[0].mxu0 %v878
    %v951 = vpop.f32.mrb[0].mxu0
    %v952 = vadd.f32 0.0, %v951
    %v953 = vpop.f32.mrb[0].mxu0
    %954 = vdwg.mxu0
    %v955 = vlaneseq
    %v956 = vshrl.u32 %v955, 7
    %v957 = vsub.s32 0, %v956
    %v958 = vrot.slane %v872, %v957
    %959 = vmatprep.subr.mxu0 0.0
    %960 = vmatpush1.msra.mxu0 %v947
    %961 = vmatprep.subr.mxu0 0.0
    %962 = vmatpush1.msra.mxu0 %v952
    %963 = vmatprep.subr.mxu0 0.0
    %964 = vmatpush1.msra.mxu0 0.0
    %965 = vmatprep.subr.mxu0 0.0
    %966 = vmatpush1.msra.mxu0 0.0
    %967 = vmatprep.subr.mxu0 0.0
    %968 = vmatpush1.msra.mxu0 0.0
    %969 = vmatprep.subr.mxu0 0.0
    %970 = vmatpush1.msra.mxu0 0.0
    %971 = vmatprep.subr.mxu0 0.0
    %972 = vmatpush1.msra.mxu0 0.0
    %973 = vmatprep.subr.mxu0 0.0
    %974 = vmatpush1.msra.mxu0 0.0
    %975 = vmatprep.subr.mxu0 0.0
    %976 = vmatpush1.msra.mxu0 0.0
    %977 = vmatprep.subr.mxu0 0.0
    %978 = vmatpush1.msra.mxu0 0.0
    %979 = vmatprep.subr.mxu0 0.0
    %980 = vmatpush1.msra.mxu0 0.0
    %981 = vmatprep.subr.mxu0 0.0
    %982 = vmatpush1.msra.mxu0 0.0
    %983 = vmatprep.subr.mxu0 0.0
    %984 = vmatpush1.msra.mxu0 0.0
    %985 = vmatprep.subr.mxu0 0.0
    %986 = vmatpush1.msra.mxu0 0.0
    %987 = vmatprep.subr.mxu0 0.0
    %988 = vmatpush1.msra.mxu0 0.0
    %989 = vmatprep.subr.mxu0 0.0
    %990 = vmatpush1.msra.mxu0 0.0
    %991 = vmatprep.subr.mxu0 0.0
    %992 = vmatpush1.msra.mxu0 0.0
    %993 = vmatprep.subr.mxu0 0.0
    %994 = vmatpush1.msra.mxu0 0.0
    %995 = vmatprep.subr.mxu0 0.0
    %996 = vmatpush1.msra.mxu0 0.0
    %997 = vmatprep.subr.mxu0 0.0
    %998 = vmatpush1.msra.mxu0 0.0
    %999 = vmatprep.subr.mxu0 0.0
    %1000 = vmatpush1.msra.mxu0 0.0
    %1001 = vmatprep.subr.mxu0 0.0
    %1002 = vmatpush1.msra.mxu0 0.0
    %1003 = vmatprep.subr.mxu0 0.0
    %1004 = vmatpush1.msra.mxu0 0.0
    %1005 = vmatprep.subr.mxu0 0.0
    %1006 = vmatpush1.msra.mxu0 0.0
    %1007 = vmatprep.subr.mxu0 0.0
    %1008 = vmatpush1.msra.mxu0 0.0
    %1009 = vmatprep.subr.mxu0 0.0
    %1010 = vmatpush1.msra.mxu0 0.0
    %1011 = vmatprep.subr.mxu0 0.0
    %1012 = vmatpush1.msra.mxu0 0.0
    %1013 = vmatprep.subr.mxu0 0.0
    %1014 = vmatpush1.msra.mxu0 0.0
    %1015 = vmatprep.subr.mxu0 0.0
    %1016 = vmatpush1.msra.mxu0 0.0
    %1017 = vmatprep.subr.mxu0 0.0
    %1018 = vmatpush1.msra.mxu0 0.0
    %1019 = vmatprep.subr.mxu0 0.0
    %1020 = vmatpush1.msra.mxu0 0.0
    %1021 = vmatprep.subr.mxu0 0.0
    %1022 = vmatpush1.msra.mxu0 0.0
    %1023 = vmatprep.mubr.f32.mxu0 0.0
    %1024 = vmatmul.mubr.f32.gmra.mrb[0].mxu0 %v696
    %v1025 = vpop.f32.mrb[0].mxu0
    %v1026 = vadd.f32 %v958, %v1025
    %v1027 = vpop.f32.mrb[0].mxu0
    %1028 = vmatprep.mubr.f32.mxu0 0.0
    %1029 = vmatmul.mubr.f32.gmra.mrb[0].mxu0 %v699
    %v1030 = vpop.f32.mrb[0].mxu0
    %v1031 = vadd.f32 %v958, %v1030
    %v1032 = vpop.f32.mrb[0].mxu0
    %1033 = vdwg.mxu0
    %v1034 = vmax.f32 %v1026, 0.0
    %v1035 = vmax.f32 %v1031, 0.0
    %v1036 = vld [vmem:[#allocation5 + $0x28] sm:$0xff]
    %v1037 = vld [vmem:[#allocation5 + $0x30] sm:$0xff]
    %v1038 = vld [vmem:[#allocation5 + $0x38] sm:$0xff]
    %v1039 = vld [vmem:[#allocation5 + $0x40] sm:$0xff]
    %v1040 = vld [vmem:[%s3 + $0x2] sm:$0x1]
    %v1041 = vlaneseq
    %v1042 = vshrl.u32 %v1041, 7
    %v1043 = vsub.s32 0, %v1042
    %v1044 = vrot.slane %v1040, %v1043
    %v1046 = vsel %vm873, %v1034, 0
    %v1049 = vsel %vm873, %v1035, 0
    %1051 = vmatprep.subr.mxu0 0.0
    %1052 = vmatpush1.msra.mxu0 %v1036
    %1053 = vmatprep.subr.mxu0 0.0
    %1054 = vmatpush1.msra.mxu0 %v1037
    %1055 = vmatprep.subr.mxu0 0.0
    %1056 = vmatpush1.msra.mxu0 %v1038
    %1057 = vmatprep.subr.mxu0 0.0
    %1058 = vmatpush1.msra.mxu0 %v1039
    %1059 = vmatprep.subr.mxu0 0.0
    %1060 = vmatpush1.msra.mxu0 0.0
    %1061 = vmatprep.subr.mxu0 0.0
    %1062 = vmatpush1.msra.mxu0 0.0
    %1063 = vmatprep.subr.mxu0 0.0
    %1064 = vmatpush1.msra.mxu0 0.0
    %1065 = vmatprep.subr.mxu0 0.0
    %1066 = vmatpush1.msra.mxu0 0.0
    %1067 = vmatprep.subr.mxu0 0.0
    %1068 = vmatpush1.msra.mxu0 0.0
    %1069 = vmatprep.subr.mxu0 0.0
    %1070 = vmatpush1.msra.mxu0 0.0
    %1071 = vmatprep.subr.mxu0 0.0
    %1072 = vmatpush1.msra.mxu0 0.0
    %1073 = vmatprep.subr.mxu0 0.0
    %1074 = vmatpush1.msra.mxu0 0.0
    %1075 = vmatprep.subr.mxu0 0.0
    %1076 = vmatpush1.msra.mxu0 0.0
    %1077 = vmatprep.subr.mxu0 0.0
    %1078 = vmatpush1.msra.mxu0 0.0
    %1079 = vmatprep.subr.mxu0 0.0
    %1080 = vmatpush1.msra.mxu0 0.0
    %1081 = vmatprep.subr.mxu0 0.0
    %1082 = vmatpush1.msra.mxu0 0.0
    %1083 = vmatprep.subr.mxu0 0.0
    %1084 = vmatpush1.msra.mxu0 0.0
    %1085 = vmatprep.subr.mxu0 0.0
    %1086 = vmatpush1.msra.mxu0 0.0
    %1087 = vmatprep.subr.mxu0 0.0
    %1088 = vmatpush1.msra.mxu0 0.0
    %1089 = vmatprep.subr.mxu0 0.0
    %1090 = vmatpush1.msra.mxu0 0.0
    %1091 = vmatprep.subr.mxu0 0.0
    %1092 = vmatpush1.msra.mxu0 0.0
    %1093 = vmatprep.subr.mxu0 0.0
    %1094 = vmatpush1.msra.mxu0 0.0
    %1095 = vmatprep.subr.mxu0 0.0
    %1096 = vmatpush1.msra.mxu0 0.0
    %1097 = vmatprep.subr.mxu0 0.0
    %1098 = vmatpush1.msra.mxu0 0.0
    %1099 = vmatprep.subr.mxu0 0.0
    %1100 = vmatpush1.msra.mxu0 0.0
    %1101 = vmatprep.subr.mxu0 0.0
    %1102 = vmatpush1.msra.mxu0 0.0
    %1103 = vmatprep.subr.mxu0 0.0
    %1104 = vmatpush1.msra.mxu0 0.0
    %1105 = vmatprep.subr.mxu0 0.0
    %1106 = vmatpush1.msra.mxu0 0.0
    %1107 = vmatprep.subr.mxu0 0.0
    %1108 = vmatpush1.msra.mxu0 0.0
    %1109 = vmatprep.subr.mxu0 0.0
    %1110 = vmatpush1.msra.mxu0 0.0
    %1111 = vmatprep.subr.mxu0 0.0
    %1112 = vmatpush1.msra.mxu0 0.0
    %1113 = vmatprep.subr.mxu0 0.0
    %1114 = vmatpush1.msra.mxu0 0.0
    %1115 = vmatprep.mubr.f32.mxu0 0.0
    %1116 = vmatmul.mubr.f32.gmra.mrb[0].mxu0 %v1046
    %v1117 = vpop.f32.mrb[0].mxu0
    %v1118 = vadd.f32 %v1044, %v1117
    %v1119 = vpop.f32.mrb[0].mxu0
    %1120 = vmatprep.mubr.f32.mxu0 0.0
    %1121 = vmatmul.mubr.f32.gmra.mrb[0].mxu0 %v1049
    %v1122 = vpop.f32.mrb[0].mxu0
    %v1123 = vadd.f32 %v1044, %v1122
    %v1124 = vpop.f32.mrb[0].mxu0
    %1125 = vdwg.mxu0
    %1126 = vst [vmem:[%s4] sm:$0xff] %v1118
    %1127 = vst [vmem:[%s4 + $0x8] sm:$0xff] %v1123
    // Predicated region
    $region26: #{gnn_forward.1} parent=1 // pred_check
      _
    $region27: #{gnn_forward.1} parent=1 // pred_check_branch
      %1129 = sbr.rel (0) target = $region29
    $region28: #{gnn_forward.1} parent=1 // pred_region
      _
    $region29: #{gnn_forward.1} parent=1 // pred_fallthru
      _
    // Predicated region
    $region30: #{gnn_forward.1} parent=1 // pred_check
      _
    $region31: #{gnn_forward.1} parent=1 // pred_check_branch
      %1131 = sbr.rel (0) target = $region33
    $region32: #{gnn_forward.1} parent=1 // pred_region
      _
    $region33: #{gnn_forward.1} parent=1 // pred_fallthru
      _
    %1132 = vsyncpa [#allocation3], 1
    %1133 = vsyncpa [#allocation4], 1

</llo_original>
